<compile_context>
chip_gen: v6e
topology: v6e:2x2x1
jax: 0.10.0
libtpu: 0.0.40
codegen_flags: <defaults>
</compile_context>

<pallas_src>
import functools
import math

import jax
import jax.numpy as jnp
from jax import lax
from jax.experimental import pallas as pl
from jax.experimental.pallas import tpu as pltpu


def _round_up(x, m):
    return (x + m - 1) // m * m


def _dsconv_kernel(x_ref, dww_ref, dwb_ref, pww_ref, pwb_ref, o_ref, *,
                   stride, th, th_in, w_out):
    """One (batch, row-tile) grid step.

    x_ref  : (s*s*th_in, Wq, CP) phase-major rows of the padded NHWC input
                                 covering th output rows + halo
    dww_ref: (3, 3, CP)          depthwise weights (BN scale folded in), f32
    dwb_ref: (1, CP)             depthwise BN bias, f32
    pww_ref: (CP, QP)            pointwise weights (BN scale folded in);
                                 bf16 on v6e/v7x, f32 on v5e
    pwb_ref: (1, QP)             pointwise BN bias, f32
    o_ref  : (th*w_out, QP)      lane-dense output slab
    """
    s = stride
    cp = x_ref.shape[-1]
    dww = dww_ref[...]                                   # (3, 3, CP), tiny

    # 3x3 depthwise conv.  Each distinct (stride-phase, kh) row slab is read
    # from VMEM exactly once (aligned, full wq width); kw-shifted taps come
    # from the already-loaded value (in-register sublane shift) instead of a
    # second, sublane-misaligned window load.
    slabs = {}
    acc = None
    for kh in range(3):
        ih, hph = kh // s, kh % s
        for kw in range(3):
            iw, wph = kw // s, kw % s
            key = (hph * s + wph, ih)
            if key not in slabs:
                row0 = key[0] * th_in + ih
                slabs[key] = x_ref[row0:row0 + th, :, :]   # (th, Wq, CP)
            tap = slabs[key][:, iw:iw + w_out, :]          # (th, w_out, CP)
            term = tap * dww[kh, kw, :]
            acc = term if acc is None else acc + term

    # depthwise BN bias (scale already folded into dww) + ReLU6
    y = jnp.clip(acc + dwb_ref[...], 0.0, 6.0)             # (th, w_out, CP)

    # Pointwise 1x1 conv == one MXU matmul over the channel axis (bf16
    # operands on v6e/v7x, f32 accumulation).  The reshape is a layout no-op
    # when w_out % 8 == 0 (true for the test shapes; otherwise a sublane
    # repack appears — perf only).
    y2 = jnp.dot(y.reshape(th * w_out, cp).astype(pww_ref.dtype),
                 pww_ref[...], preferred_element_type=jnp.float32)

    # pointwise BN bias + ReLU6, lane-dense store (QP multiple of 128)
    o_ref[...] = jnp.clip(y2 + pwb_ref[...], 0.0, 6.0).astype(o_ref.dtype)


def depthwise_separable_conv(x_nchw, dw_w, dw_scale, dw_bias, pw_w, pw_scale,
                             pw_bias, *, stride, tile_rows=None,
                             use_bf16_matmul=True):
    """Fused depthwise-separable conv block (inference-mode BatchNorm).

    x_nchw: (N, Cin, H, W) f32.  dw_w: (3,3,Cin), pw_w: (Cin,Cout);
    *_scale/_bias are folded BN params.  Returns (N, Cout, Hout, Wout) f32.
    """
    n, c_in, h, w = x_nchw.shape
    c_out = pw_w.shape[1]
    s = stride
    h_out = (h + 2 - 3) // s + 1
    w_out = (w + 2 - 3) // s + 1

    # Lane-dense channel padding.
    # TODO(synk): for tiny Cin (e.g. a 3-channel stem) a W-in-lanes layout
    # would avoid the 128x padding; kept channel-last (the Cin>=128 case).
    cp = _round_up(c_in, 128)
    qp = _round_up(c_out, 128)

    # ---- weight prep (one-time constant transforms, BN scales folded) ----
    dww = dw_w * dw_scale[None, None, :]                            # (3,3,Cin)
    dww = jnp.pad(dww, ((0, 0), (0, 0), (0, cp - c_in)))            # (3,3,CP)
    dwb = jnp.pad(dw_bias, (0, cp - c_in)).reshape(1, cp)           # (1,CP)
    pww = pw_w * pw_scale[None, :]                                  # (Cin,Cout)
    pww = jnp.pad(pww, ((0, cp - c_in), (0, qp - c_out)))           # (CP,QP)
    if use_bf16_matmul:
        pww = pww.astype(jnp.bfloat16)   # MXU fast path on v6e/v7x
    pwb = jnp.pad(pw_bias, (0, qp - c_out)).reshape(1, qp)          # (1,QP)

    # ---- input layout: NCHW -> NHWC, conv zero-pad, channel pad ----
    # TODO(synk): keep activations NHWC end-to-end in a real network so this
    # transpose (a full HBM pass) fuses into the producer.
    x_nhwc = jnp.transpose(x_nchw, (0, 2, 3, 1))                    # (N,H,W,Cin)
    x_pad = jnp.pad(x_nhwc, ((0, 0), (1, 1), (1, 1), (0, cp - c_in)))
    hp, wp = h + 2, w + 2

    # Space-to-phase decomposition so every in-kernel tap is a unit-stride
    # window of one stride-phase.  Skipped entirely at stride 1.
    if s == 1:
        hq, wq = hp, wp
        x_ph = x_pad[:, None]                                       # (N,1,Hq,Wq,CP)
    else:
        hq, wq = -(-hp // s), -(-wp // s)
        x_tmp = jnp.pad(x_pad, ((0, 0), (0, hq * s - hp),
                                (0, wq * s - wp), (0, 0)))
        x_ph = x_tmp.reshape(n, hq, s, wq, s, cp).transpose(0, 2, 4, 1, 3, 5)
        x_ph = x_ph.reshape(n, s * s, hq, wq, cp)                   # (N,s*s,Hq,Wq,CP)

    # ---- spatial row tiling ----
    halo = 2 // s                           # extra phase rows per tile
    row_align = 8 // math.gcd(w_out, 8)     # keep th*w_out a multiple of 8
    if tile_rows is None:
        # ~8 MiB budget for input tile (x2 buffers) + output tile + f32
        # intermediates; ample headroom under the 48 MiB scoped limit below
        # (and under v7x's 64 MiB physical VMEM).
        budget = 8 * 1024 * 1024
        per_row = (2 * s * s * wq * cp + 2 * w_out * qp + 4 * w_out * cp) * 4
        tile_rows = max(1, budget // max(per_row, 1))
    th = _round_up(max(1, min(tile_rows, h_out)), row_align)
    nt = pl.cdiv(h_out, th)
    th_in = th + halo

    rows_needed = (nt - 1) * th + th_in
    if rows_needed > hq:
        x_ph = jnp.pad(x_ph, ((0, 0), (0, 0), (0, rows_needed - hq),
                              (0, 0), (0, 0)))

    # Overlapping row tiles with the halo pre-materialised: halo/th extra
    # input HBM reads, but the input stays on the automatic double-buffered
    # BlockSpec pipeline (alternative: pl.ANY + manual make_async_copy).
    row_idx = jnp.arange(nt)[:, None] * th + jnp.arange(th_in)[None, :]
    x_tiles = jnp.take(x_ph, row_idx, axis=2)       # (N,s*s,nt,th_in,Wq,CP)
    x_tiles = x_tiles.transpose(0, 2, 1, 3, 4, 5).reshape(
        n * nt, s * s * th_in, wq, cp)

    kernel = functools.partial(_dsconv_kernel, stride=s, th=th, th_in=th_in,
                               w_out=w_out)
    out_dtype = x_nchw.dtype

    def _run(single_buffer_consts):
        # Grid-invariant weight/bias operands: single-buffer them (constant
        # index_map -> a second pipeline buffer is pure VMEM waste).
        ckw = ({"pipeline_mode": pl.Buffered(1)}
               if single_buffer_consts else {})

        def const_spec(shape):
            return pl.BlockSpec(shape, lambda b, t: (0,) * len(shape), **ckw)

        return pl.pallas_call(
            kernel,
            out_shape=jax.ShapeDtypeStruct((n, nt * th * w_out, qp),
                                           out_dtype),
            grid_spec=pltpu.PrefetchScalarGridSpec(
                num_scalar_prefetch=0,
                grid=(n, nt),
                in_specs=[
                    pl.BlockSpec((None, s * s * th_in, wq, cp),
                                 lambda b, t: (b * nt + t, 0, 0, 0)),
                    const_spec((3, 3, cp)),
                    const_spec((1, cp)),
                    const_spec((cp, qp)),
                    const_spec((1, qp)),
                ],
                out_specs=pl.BlockSpec((None, th * w_out, qp),
                                       lambda b, t: (b, t, 0)),
            ),
            compiler_params=pltpu.CompilerParams(
                # batch and row-tile axes are independent -> megacore / v7x
                # dual-TC sharding.
                dimension_semantics=("parallel", "parallel"),
                # explicit scoped-VMEM limit with headroom (v7x: 64 MiB phys)
                vmem_limit_bytes=48 * 1024 * 1024),
        )(x_tiles, dww, dwb, pww, pwb)

    try:
        out = jax.block_until_ready(_run(True))
    except Exception:  # pragma: no cover
        # jax versions without BlockSpec(pipeline_mode=...): fall back to the
        # default double-buffered constants (identical results).
        out = _run(False)

    # lane-dense (rows, QP) slab -> NCHW, dropping row/channel padding.
    # TODO(synk): a real pipeline should consume the NHWC slab directly
    # instead of paying this transpose (a full HBM pass).
    out = out.reshape(n, nt * th, w_out, qp)[:, :h_out, :, :c_out]
    return jnp.transpose(out, (0, 3, 1, 2))


def _fold_bn(gamma, beta, mean, var, eps=1e-5):
    scale = gamma / jnp.sqrt(var + eps)
    bias = beta - mean * scale
    return scale, bias


def _reference(x_nchw, dw_w_torch, dw_scale, dw_bias, pw_w_torch,
               pw_scale, pw_bias, *, stride):
    """Pure-JAX reference (NCHW, matches PyTorch conv semantics, f32)."""
    c_in = x_nchw.shape[1]
    y = lax.conv_general_dilated(
        x_nchw, dw_w_torch, window_strides=(stride, stride),
        padding=((1, 1), (1, 1)), feature_group_count=c_in,
        dimension_numbers=("NCHW", "OIHW", "NCHW"))
    y = y * dw_scale[None, :, None, None] + dw_bias[None, :, None, None]
    y = jnp.clip(y, 0.0, 6.0)
    z = lax.conv_general_dilated(
        y, pw_w_torch, window_strides=(1, 1), padding=((0, 0), (0, 0)),
        dimension_numbers=("NCHW", "OIHW", "NCHW"))
    z = z * pw_scale[None, :, None, None] + pw_bias[None, :, None, None]
    return jnp.clip(z, 0.0, 6.0)


if __name__ == "__main__":
    key = jax.random.PRNGKey(0)
    N, C_IN, C_OUT, H, W, STRIDE = 2, 4, 8, 16, 16, 2

    ks = jax.random.split(key, 10)
    x = jax.random.normal(ks[0], (N, C_IN, H, W), jnp.float32)

    # Depthwise conv weight, PyTorch layout (Cin, 1, 3, 3)
    dw_w_torch = jax.random.normal(ks[1], (C_IN, 1, 3, 3), jnp.float32) * 0.5
    # Pointwise conv weight, PyTorch layout (Cout, Cin, 1, 1)
    pw_w_torch = jax.random.normal(ks[2], (C_OUT, C_IN, 1, 1), jnp.float32) * 0.5

    # BatchNorm params (inference mode), deterministic
    dw_gamma = 1.0 + 0.1 * jax.random.normal(ks[3], (C_IN,), jnp.float32)
    dw_beta = 0.1 * jax.random.normal(ks[4], (C_IN,), jnp.float32)
    dw_mean = 0.1 * jax.random.normal(ks[5], (C_IN,), jnp.float32)
    dw_var = jnp.abs(jax.random.normal(ks[6], (C_IN,), jnp.float32)) + 0.5
    pw_gamma = 1.0 + 0.1 * jax.random.normal(ks[7], (C_OUT,), jnp.float32)
    pw_beta = 0.1 * jax.random.normal(ks[8], (C_OUT,), jnp.float32)
    pw_mean = jnp.zeros((C_OUT,), jnp.float32)
    pw_var = jnp.ones((C_OUT,), jnp.float32)

    dw_scale, dw_bias = _fold_bn(dw_gamma, dw_beta, dw_mean, dw_var)
    pw_scale, pw_bias = _fold_bn(pw_gamma, pw_beta, pw_mean, pw_var)

    # Kernel weight layouts: depthwise (3,3,Cin), pointwise (Cin,Cout)
    dw_w_k = jnp.transpose(dw_w_torch[:, 0, :, :], (1, 2, 0))
    pw_w_k = jnp.transpose(pw_w_torch[:, :, 0, 0], (1, 0))

    # bf16 MXU operands on v6e/v7x (per review); keep f32 on v5 and older.
    kind = jax.devices()[0].device_kind.lower()
    use_bf16 = not any(v in kind for v in ("v2", "v3", "v4", "v5"))

    # tile_rows=4 -> 2 row tiles per image, exercising the halo/tiling path.
    out = depthwise_separable_conv(
        x, dw_w_k, dw_scale, dw_bias, pw_w_k, pw_scale, pw_bias,
        stride=STRIDE, tile_rows=4, use_bf16_matmul=use_bf16)
    out = jax.block_until_ready(out)

    ref = _reference(x, dw_w_torch, dw_scale, dw_bias, pw_w_torch,
                     pw_scale, pw_bias, stride=STRIDE)
    assert out.shape == ref.shape == (N, C_OUT, H // STRIDE, W // STRIDE)
    # f32 path is bit-close; the bf16 pointwise-matmul path (operands rounded
    # to bf16, f32 accumulation) needs a looser tolerance.
    tol = (dict(atol=1e-1, rtol=1e-1) if use_bf16
           else dict(atol=1e-4, rtol=1e-4))
    assert jnp.allclose(out, ref, **tol), float(jnp.max(jnp.abs(out - ref)))

    print("KERNEL_OK")
</pallas_src>

<mosaic_0001>
module attributes {stable_mosaic.version = 11 : i64} {
  func.func @_dsconv_kernel(%arg0: i32, %arg1: i32, %arg2: memref<1x20x9x128xf32, #tpu.memory_space<vmem>>, %arg3: memref<3x3x128xf32, #tpu.memory_space<vmem>>, %arg4: memref<1x128xf32, #tpu.memory_space<vmem>>, %arg5: memref<128x128xbf16, #tpu.memory_space<vmem>>, %arg6: memref<1x128xf32, #tpu.memory_space<vmem>>, %arg7: memref<1x32x128xf32, #tpu.memory_space<vmem>>) attributes {dimension_semantics = [#tpu.dimension_semantics<parallel>, #tpu.dimension_semantics<parallel>], iteration_bounds = array<i64: 2, 2>, scalar_prefetch = 0 : i64, scratch_operands = 0 : i64, tpu.core_type = #tpu.core_type<tc>, window_params = [{transform_indices = @transform_0, window_bounds = array<i64: 1, 20, 9, 128>}, {pipeline_mode = #tpu.pipeline_mode<synchronous>, transform_indices = @transform_1, window_bounds = array<i64: 3, 3, 128>}, {pipeline_mode = #tpu.pipeline_mode<synchronous>, transform_indices = @transform_2, window_bounds = array<i64: 1, 128>}, {pipeline_mode = #tpu.pipeline_mode<synchronous>, transform_indices = @transform_3, window_bounds = array<i64: 128, 128>}, {pipeline_mode = #tpu.pipeline_mode<synchronous>, transform_indices = @transform_4, window_bounds = array<i64: 1, 128>}, {transform_indices = @transform_5, window_bounds = array<i64: 1, 32, 128>}]} {
    %c0 = arith.constant 0 : index
    %c0_0 = arith.constant 0 : index
    %c0_1 = arith.constant 0 : index
    %0 = vector.load %arg3[%c0, %c0_0, %c0_1] : memref<3x3x128xf32, #tpu.memory_space<vmem>>, vector<3x3x128xf32>
    %c0_2 = arith.constant 0 : index
    %c0_3 = arith.constant 0 : index
    %c0_4 = arith.constant 0 : index
    %c0_5 = arith.constant 0 : index
    %1 = vector.load %arg2[%c0_2, %c0_3, %c0_4, %c0_5] : memref<1x20x9x128xf32, #tpu.memory_space<vmem>>, vector<1x4x9x128xf32>
    %2 = vector.shape_cast %1 : vector<1x4x9x128xf32> to vector<4x9x128xf32>
    %3 = vector.extract_strided_slice %2 {offsets = [0, 0, 0], sizes = [4, 8, 128], strides = [1, 1, 1]} : vector<4x9x128xf32> to vector<4x8x128xf32>
    %4 = vector.extract_strided_slice %0 {offsets = [0, 0, 0], sizes = [1, 1, 128], strides = [1, 1, 1]} : vector<3x3x128xf32> to vector<1x1x128xf32>
    %5 = vector.shape_cast %4 : vector<1x1x128xf32> to vector<128xf32>
    %6 = vector.shape_cast %5 : vector<128xf32> to vector<1x1x128xf32>
    %7 = vector.broadcast %6 : vector<1x1x128xf32> to vector<4x8x128xf32>
    %8 = arith.mulf %3, %7 : vector<4x8x128xf32>
    %c0_6 = arith.constant 0 : index
    %c5 = arith.constant 5 : index
    %c0_7 = arith.constant 0 : index
    %c0_8 = arith.constant 0 : index
    %9 = vector.load %arg2[%c0_6, %c5, %c0_7, %c0_8] : memref<1x20x9x128xf32, #tpu.memory_space<vmem>>, vector<1x4x9x128xf32>
    %10 = vector.shape_cast %9 : vector<1x4x9x128xf32> to vector<4x9x128xf32>
    %11 = vector.extract_strided_slice %10 {offsets = [0, 0, 0], sizes = [4, 8, 128], strides = [1, 1, 1]} : vector<4x9x128xf32> to vector<4x8x128xf32>
    %12 = vector.extract_strided_slice %0 {offsets = [0, 1, 0], sizes = [1, 1, 128], strides = [1, 1, 1]} : vector<3x3x128xf32> to vector<1x1x128xf32>
    %13 = vector.shape_cast %12 : vector<1x1x128xf32> to vector<128xf32>
    %14 = vector.shape_cast %13 : vector<128xf32> to vector<1x1x128xf32>
    %15 = vector.broadcast %14 : vector<1x1x128xf32> to vector<4x8x128xf32>
    %16 = arith.mulf %11, %15 : vector<4x8x128xf32>
    %17 = arith.addf %8, %16 : vector<4x8x128xf32>
    %18 = vector.extract_strided_slice %2 {offsets = [0, 1, 0], sizes = [4, 8, 128], strides = [1, 1, 1]} : vector<4x9x128xf32> to vector<4x8x128xf32>
    %19 = vector.extract_strided_slice %0 {offsets = [0, 2, 0], sizes = [1, 1, 128], strides = [1, 1, 1]} : vector<3x3x128xf32> to vector<1x1x128xf32>
    %20 = vector.shape_cast %19 : vector<1x1x128xf32> to vector<128xf32>
    %21 = vector.shape_cast %20 : vector<128xf32> to vector<1x1x128xf32>
    %22 = vector.broadcast %21 : vector<1x1x128xf32> to vector<4x8x128xf32>
    %23 = arith.mulf %18, %22 : vector<4x8x128xf32>
    %24 = arith.addf %17, %23 : vector<4x8x128xf32>
    %c0_9 = arith.constant 0 : index
    %c10 = arith.constant 10 : index
    %c0_10 = arith.constant 0 : index
    %c0_11 = arith.constant 0 : index
    %25 = vector.load %arg2[%c0_9, %c10, %c0_10, %c0_11] : memref<1x20x9x128xf32, #tpu.memory_space<vmem>>, vector<1x4x9x128xf32>
    %26 = vector.shape_cast %25 : vector<1x4x9x128xf32> to vector<4x9x128xf32>
    %27 = vector.extract_strided_slice %26 {offsets = [0, 0, 0], sizes = [4, 8, 128], strides = [1, 1, 1]} : vector<4x9x128xf32> to vector<4x8x128xf32>
    %28 = vector.extract_strided_slice %0 {offsets = [1, 0, 0], sizes = [1, 1, 128], strides = [1, 1, 1]} : vector<3x3x128xf32> to vector<1x1x128xf32>
    %29 = vector.shape_cast %28 : vector<1x1x128xf32> to vector<128xf32>
    %30 = vector.shape_cast %29 : vector<128xf32> to vector<1x1x128xf32>
    %31 = vector.broadcast %30 : vector<1x1x128xf32> to vector<4x8x128xf32>
    %32 = arith.mulf %27, %31 : vector<4x8x128xf32>
    %33 = arith.addf %24, %32 : vector<4x8x128xf32>
    %c0_12 = arith.constant 0 : index
    %c15 = arith.constant 15 : index
    %c0_13 = arith.constant 0 : index
    %c0_14 = arith.constant 0 : index
    %34 = vector.load %arg2[%c0_12, %c15, %c0_13, %c0_14] : memref<1x20x9x128xf32, #tpu.memory_space<vmem>>, vector<1x4x9x128xf32>
    %35 = vector.shape_cast %34 : vector<1x4x9x128xf32> to vector<4x9x128xf32>
    %36 = vector.extract_strided_slice %35 {offsets = [0, 0, 0], sizes = [4, 8, 128], strides = [1, 1, 1]} : vector<4x9x128xf32> to vector<4x8x128xf32>
    %37 = vector.extract_strided_slice %0 {offsets = [1, 1, 0], sizes = [1, 1, 128], strides = [1, 1, 1]} : vector<3x3x128xf32> to vector<1x1x128xf32>
    %38 = vector.shape_cast %37 : vector<1x1x128xf32> to vector<128xf32>
    %39 = vector.shape_cast %38 : vector<128xf32> to vector<1x1x128xf32>
    %40 = vector.broadcast %39 : vector<1x1x128xf32> to vector<4x8x128xf32>
    %41 = arith.mulf %36, %40 : vector<4x8x128xf32>
    %42 = arith.addf %33, %41 : vector<4x8x128xf32>
    %43 = vector.extract_strided_slice %26 {offsets = [0, 1, 0], sizes = [4, 8, 128], strides = [1, 1, 1]} : vector<4x9x128xf32> to vector<4x8x128xf32>
    %44 = vector.extract_strided_slice %0 {offsets = [1, 2, 0], sizes = [1, 1, 128], strides = [1, 1, 1]} : vector<3x3x128xf32> to vector<1x1x128xf32>
    %45 = vector.shape_cast %44 : vector<1x1x128xf32> to vector<128xf32>
    %46 = vector.shape_cast %45 : vector<128xf32> to vector<1x1x128xf32>
    %47 = vector.broadcast %46 : vector<1x1x128xf32> to vector<4x8x128xf32>
    %48 = arith.mulf %43, %47 : vector<4x8x128xf32>
    %49 = arith.addf %42, %48 : vector<4x8x128xf32>
    %c0_15 = arith.constant 0 : index
    %c1 = arith.constant 1 : index
    %c0_16 = arith.constant 0 : index
    %c0_17 = arith.constant 0 : index
    %50 = vector.load %arg2[%c0_15, %c1, %c0_16, %c0_17] : memref<1x20x9x128xf32, #tpu.memory_space<vmem>>, vector<1x4x9x128xf32>
    %51 = vector.shape_cast %50 : vector<1x4x9x128xf32> to vector<4x9x128xf32>
    %52 = vector.extract_strided_slice %51 {offsets = [0, 0, 0], sizes = [4, 8, 128], strides = [1, 1, 1]} : vector<4x9x128xf32> to vector<4x8x128xf32>
    %53 = vector.extract_strided_slice %0 {offsets = [2, 0, 0], sizes = [1, 1, 128], strides = [1, 1, 1]} : vector<3x3x128xf32> to vector<1x1x128xf32>
    %54 = vector.shape_cast %53 : vector<1x1x128xf32> to vector<128xf32>
    %55 = vector.shape_cast %54 : vector<128xf32> to vector<1x1x128xf32>
    %56 = vector.broadcast %55 : vector<1x1x128xf32> to vector<4x8x128xf32>
    %57 = arith.mulf %52, %56 : vector<4x8x128xf32>
    %58 = arith.addf %49, %57 : vector<4x8x128xf32>
    %c0_18 = arith.constant 0 : index
    %c6 = arith.constant 6 : index
    %c0_19 = arith.constant 0 : index
    %c0_20 = arith.constant 0 : index
    %59 = vector.load %arg2[%c0_18, %c6, %c0_19, %c0_20] : memref<1x20x9x128xf32, #tpu.memory_space<vmem>>, vector<1x4x9x128xf32>
    %60 = vector.shape_cast %59 : vector<1x4x9x128xf32> to vector<4x9x128xf32>
    %61 = vector.extract_strided_slice %60 {offsets = [0, 0, 0], sizes = [4, 8, 128], strides = [1, 1, 1]} : vector<4x9x128xf32> to vector<4x8x128xf32>
    %62 = vector.extract_strided_slice %0 {offsets = [2, 1, 0], sizes = [1, 1, 128], strides = [1, 1, 1]} : vector<3x3x128xf32> to vector<1x1x128xf32>
    %63 = vector.shape_cast %62 : vector<1x1x128xf32> to vector<128xf32>
    %64 = vector.shape_cast %63 : vector<128xf32> to vector<1x1x128xf32>
    %65 = vector.broadcast %64 : vector<1x1x128xf32> to vector<4x8x128xf32>
    %66 = arith.mulf %61, %65 : vector<4x8x128xf32>
    %67 = arith.addf %58, %66 : vector<4x8x128xf32>
    %68 = vector.extract_strided_slice %51 {offsets = [0, 1, 0], sizes = [4, 8, 128], strides = [1, 1, 1]} : vector<4x9x128xf32> to vector<4x8x128xf32>
    %69 = vector.extract_strided_slice %0 {offsets = [2, 2, 0], sizes = [1, 1, 128], strides = [1, 1, 1]} : vector<3x3x128xf32> to vector<1x1x128xf32>
    %70 = vector.shape_cast %69 : vector<1x1x128xf32> to vector<128xf32>
    %71 = vector.shape_cast %70 : vector<128xf32> to vector<1x1x128xf32>
    %72 = vector.broadcast %71 : vector<1x1x128xf32> to vector<4x8x128xf32>
    %73 = arith.mulf %68, %72 : vector<4x8x128xf32>
    %74 = arith.addf %67, %73 : vector<4x8x128xf32>
    %c0_21 = arith.constant 0 : index
    %c0_22 = arith.constant 0 : index
    %75 = vector.load %arg4[%c0_21, %c0_22] : memref<1x128xf32, #tpu.memory_space<vmem>>, vector<1x128xf32>
    %76 = vector.shape_cast %75 : vector<1x128xf32> to vector<1x1x128xf32>
    %77 = vector.broadcast %76 : vector<1x1x128xf32> to vector<4x8x128xf32>
    %78 = arith.addf %74, %77 : vector<4x8x128xf32>
    %cst = arith.constant 0.000000e+00 : f32
    %cst_23 = arith.constant 6.000000e+00 : f32
    %79 = vector.broadcast %cst : f32 to vector<4x8x128xf32>
    %80 = arith.maximumf %79, %78 : vector<4x8x128xf32>
    %81 = vector.broadcast %cst_23 : f32 to vector<4x8x128xf32>
    %82 = arith.minimumf %81, %80 : vector<4x8x128xf32>
    %83 = vector.shape_cast %82 : vector<4x8x128xf32> to vector<32x128xf32>
    %84 = arith.truncf %83 : vector<32x128xf32> to vector<32x128xbf16>
    %c0_24 = arith.constant 0 : index
    %c0_25 = arith.constant 0 : index
    %85 = vector.load %arg5[%c0_24, %c0_25] : memref<128x128xbf16, #tpu.memory_space<vmem>>, vector<128x128xbf16>
    %cst_26 = arith.constant dense<0.000000e+00> : vector<32x128xf32>
    %86 = tpu.matmul %84, %85, %cst_26 {dimension_numbers = #tpu.dot_dimension_numbers<[1], [0], [0], [1], [0, 0, 1, 1], [], []>} : vector<32x128xbf16>, vector<128x128xbf16>, vector<32x128xf32> -> vector<32x128xf32>
    %c0_27 = arith.constant 0 : index
    %c0_28 = arith.constant 0 : index
    %87 = vector.load %arg6[%c0_27, %c0_28] : memref<1x128xf32, #tpu.memory_space<vmem>>, vector<1x128xf32>
    %88 = vector.broadcast %87 : vector<1x128xf32> to vector<32x128xf32>
    %89 = arith.addf %86, %88 : vector<32x128xf32>
    %cst_29 = arith.constant 0.000000e+00 : f32
    %cst_30 = arith.constant 6.000000e+00 : f32
    %90 = vector.broadcast %cst_29 : f32 to vector<32x128xf32>
    %91 = arith.maximumf %90, %89 : vector<32x128xf32>
    %92 = vector.broadcast %cst_30 : f32 to vector<32x128xf32>
    %93 = arith.minimumf %92, %91 : vector<32x128xf32>
    %c0_31 = arith.constant 0 : index
    %c0_32 = arith.constant 0 : index
    %c0_33 = arith.constant 0 : index
    %94 = vector.load %arg7[%c0_31, %c0_32, %c0_33] : memref<1x32x128xf32, #tpu.memory_space<vmem>>, vector<1x32x128xf32>
    %95 = vector.shape_cast %94 : vector<1x32x128xf32> to vector<32x128xf32>
    %96 = vector.shape_cast %93 : vector<32x128xf32> to vector<1x32x128xf32>
    tpu.vector_store %arg7[%c0_31, %c0_32, %c0_33], %96 {strides = array<i32>} : memref<1x32x128xf32, #tpu.memory_space<vmem>>, vector<1x32x128xf32>,
    return
  }
  func.func @transform_0(%arg0: i32, %arg1: i32) -> (i32, i32, i32, i32) {
    %c2_i32 = arith.constant 2 : i32
    %0 = arith.muli %arg0, %c2_i32 : i32
    %1 = arith.addi %0, %arg1 : i32
    %c0_i32 = arith.constant 0 : i32
    %c0_i32_0 = arith.constant 0 : i32
    %c0_i32_1 = arith.constant 0 : i32
    %c0_i32_2 = arith.constant 0 : i32
    return %1, %c0_i32, %c0_i32_0, %c0_i32_1 : i32, i32, i32, i32
  }
  func.func @transform_1(%arg0: i32, %arg1: i32) -> (i32, i32, i32) {
    %c0_i32 = arith.constant 0 : i32
    %c0_i32_0 = arith.constant 0 : i32
    %c0_i32_1 = arith.constant 0 : i32
    %c0_i32_2 = arith.constant 0 : i32
    return %c0_i32, %c0_i32_0, %c0_i32_1 : i32, i32, i32
  }
  func.func @transform_2(%arg0: i32, %arg1: i32) -> (i32, i32) {
    %c0_i32 = arith.constant 0 : i32
    %c0_i32_0 = arith.constant 0 : i32
    %c0_i32_1 = arith.constant 0 : i32
    return %c0_i32, %c0_i32_0 : i32, i32
  }
  func.func @transform_3(%arg0: i32, %arg1: i32) -> (i32, i32) {
    %c0_i32 = arith.constant 0 : i32
    %c0_i32_0 = arith.constant 0 : i32
    %c0_i32_1 = arith.constant 0 : i32
    return %c0_i32, %c0_i32_0 : i32, i32
  }
  func.func @transform_4(%arg0: i32, %arg1: i32) -> (i32, i32) {
    %c0_i32 = arith.constant 0 : i32
    %c0_i32_0 = arith.constant 0 : i32
    %c0_i32_1 = arith.constant 0 : i32
    return %c0_i32, %c0_i32_0 : i32, i32
  }
  func.func @transform_5(%arg0: i32, %arg1: i32) -> (i32, i32, i32) {
    %c0_i32 = arith.constant 0 : i32
    %c0_i32_0 = arith.constant 0 : i32
    return %arg0, %arg1, %c0_i32 : i32, i32, i32
  }
}

module attributes {stable_mosaic.version = 11 : i64} {
  func.func @_dsconv_kernel(%arg0: i32, %arg1: i32, %arg2: memref<1x20x9x128xf32, #tpu.memory_space<vmem>>, %arg3: memref<3x3x128xf32, #tpu.memory_space<vmem>>, %arg4: memref<1x128xf32, #tpu.memory_space<vmem>>, %arg5: memref<128x128xbf16, #tpu.memory_space<vmem>>, %arg6: memref<1x128xf32, #tpu.memory_space<vmem>>, %arg7: memref<1x32x128xf32, #tpu.memory_space<vmem>>) attributes {dimension_semantics = [#tpu.dimension_semantics<parallel>, #tpu.dimension_semantics<parallel>], iteration_bounds = array<i64: 2, 2>, scalar_prefetch = 0 : i64, scratch_operands = 0 : i64, tpu.core_type = #tpu.core_type<tc>, window_params = [{transform_indices = @transform_0, window_bounds = array<i64: 1, 20, 9, 128>}, {pipeline_mode = #tpu.pipeline_mode<synchronous>, transform_indices = @transform_1, window_bounds = array<i64: 3, 3, 128>}, {pipeline_mode = #tpu.pipeline_mode<synchronous>, transform_indices = @transform_2, window_bounds = array<i64: 1, 128>}, {pipeline_mode = #tpu.pipeline_mode<synchronous>, transform_indices = @transform_3, window_bounds = array<i64: 128, 128>}, {pipeline_mode = #tpu.pipeline_mode<synchronous>, transform_indices = @transform_4, window_bounds = array<i64: 1, 128>}, {transform_indices = @transform_5, window_bounds = array<i64: 1, 32, 128>}]} {
    %c0 = arith.constant 0 : index
    %c0_0 = arith.constant 0 : index
    %c0_1 = arith.constant 0 : index
    %0 = vector.load %arg3[%c0, %c0_0, %c0_1] : memref<3x3x128xf32, #tpu.memory_space<vmem>>, vector<3x3x128xf32>
    %c0_2 = arith.constant 0 : index
    %c0_3 = arith.constant 0 : index
    %c0_4 = arith.constant 0 : index
    %c0_5 = arith.constant 0 : index
    %1 = vector.load %arg2[%c0_2, %c0_3, %c0_4, %c0_5] : memref<1x20x9x128xf32, #tpu.memory_space<vmem>>, vector<1x4x9x128xf32>
    %2 = vector.shape_cast %1 : vector<1x4x9x128xf32> to vector<4x9x128xf32>
    %3 = vector.extract_strided_slice %2 {offsets = [0, 0, 0], sizes = [4, 8, 128], strides = [1, 1, 1]} : vector<4x9x128xf32> to vector<4x8x128xf32>
    %4 = vector.extract_strided_slice %0 {offsets = [0, 0, 0], sizes = [1, 1, 128], strides = [1, 1, 1]} : vector<3x3x128xf32> to vector<1x1x128xf32>
    %5 = vector.shape_cast %4 : vector<1x1x128xf32> to vector<128xf32>
    %6 = vector.shape_cast %5 : vector<128xf32> to vector<1x1x128xf32>
    %7 = vector.broadcast %6 : vector<1x1x128xf32> to vector<4x8x128xf32>
    %8 = arith.mulf %3, %7 : vector<4x8x128xf32>
    %c0_6 = arith.constant 0 : index
    %c5 = arith.constant 5 : index
    %c0_7 = arith.constant 0 : index
    %c0_8 = arith.constant 0 : index
    %9 = vector.load %arg2[%c0_6, %c5, %c0_7, %c0_8] : memref<1x20x9x128xf32, #tpu.memory_space<vmem>>, vector<1x4x9x128xf32>
    %10 = vector.shape_cast %9 : vector<1x4x9x128xf32> to vector<4x9x128xf32>
    %11 = vector.extract_strided_slice %10 {offsets = [0, 0, 0], sizes = [4, 8, 128], strides = [1, 1, 1]} : vector<4x9x128xf32> to vector<4x8x128xf32>
    %12 = vector.extract_strided_slice %0 {offsets = [0, 1, 0], sizes = [1, 1, 128], strides = [1, 1, 1]} : vector<3x3x128xf32> to vector<1x1x128xf32>
    %13 = vector.shape_cast %12 : vector<1x1x128xf32> to vector<128xf32>
    %14 = vector.shape_cast %13 : vector<128xf32> to vector<1x1x128xf32>
    %15 = vector.broadcast %14 : vector<1x1x128xf32> to vector<4x8x128xf32>
    %16 = arith.mulf %11, %15 : vector<4x8x128xf32>
    %17 = arith.addf %8, %16 : vector<4x8x128xf32>
    %18 = vector.extract_strided_slice %2 {offsets = [0, 1, 0], sizes = [4, 8, 128], strides = [1, 1, 1]} : vector<4x9x128xf32> to vector<4x8x128xf32>
    %19 = vector.extract_strided_slice %0 {offsets = [0, 2, 0], sizes = [1, 1, 128], strides = [1, 1, 1]} : vector<3x3x128xf32> to vector<1x1x128xf32>
    %20 = vector.shape_cast %19 : vector<1x1x128xf32> to vector<128xf32>
    %21 = vector.shape_cast %20 : vector<128xf32> to vector<1x1x128xf32>
    %22 = vector.broadcast %21 : vector<1x1x128xf32> to vector<4x8x128xf32>
    %23 = arith.mulf %18, %22 : vector<4x8x128xf32>
    %24 = arith.addf %17, %23 : vector<4x8x128xf32>
    %c0_9 = arith.constant 0 : index
    %c10 = arith.constant 10 : index
    %c0_10 = arith.constant 0 : index
    %c0_11 = arith.constant 0 : index
    %25 = vector.load %arg2[%c0_9, %c10, %c0_10, %c0_11] : memref<1x20x9x128xf32, #tpu.memory_space<vmem>>, vector<1x4x9x128xf32>
    %26 = vector.shape_cast %25 : vector<1x4x9x128xf32> to vector<4x9x128xf32>
    %27 = vector.extract_strided_slice %26 {offsets = [0, 0, 0], sizes = [4, 8, 128], strides = [1, 1, 1]} : vector<4x9x128xf32> to vector<4x8x128xf32>
    %28 = vector.extract_strided_slice %0 {offsets = [1, 0, 0], sizes = [1, 1, 128], strides = [1, 1, 1]} : vector<3x3x128xf32> to vector<1x1x128xf32>
    %29 = vector.shape_cast %28 : vector<1x1x128xf32> to vector<128xf32>
    %30 = vector.shape_cast %29 : vector<128xf32> to vector<1x1x128xf32>
    %31 = vector.broadcast %30 : vector<1x1x128xf32> to vector<4x8x128xf32>
    %32 = arith.mulf %27, %31 : vector<4x8x128xf32>
    %33 = arith.addf %24, %32 : vector<4x8x128xf32>
    %c0_12 = arith.constant 0 : index
    %c15 = arith.constant 15 : index
    %c0_13 = arith.constant 0 : index
    %c0_14 = arith.constant 0 : index
    %34 = vector.load %arg2[%c0_12, %c15, %c0_13, %c0_14] : memref<1x20x9x128xf32, #tpu.memory_space<vmem>>, vector<1x4x9x128xf32>
    %35 = vector.shape_cast %34 : vector<1x4x9x128xf32> to vector<4x9x128xf32>
    %36 = vector.extract_strided_slice %35 {offsets = [0, 0, 0], sizes = [4, 8, 128], strides = [1, 1, 1]} : vector<4x9x128xf32> to vector<4x8x128xf32>
    %37 = vector.extract_strided_slice %0 {offsets = [1, 1, 0], sizes = [1, 1, 128], strides = [1, 1, 1]} : vector<3x3x128xf32> to vector<1x1x128xf32>
    %38 = vector.shape_cast %37 : vector<1x1x128xf32> to vector<128xf32>
    %39 = vector.shape_cast %38 : vector<128xf32> to vector<1x1x128xf32>
    %40 = vector.broadcast %39 : vector<1x1x128xf32> to vector<4x8x128xf32>
    %41 = arith.mulf %36, %40 : vector<4x8x128xf32>
    %42 = arith.addf %33, %41 : vector<4x8x128xf32>
    %43 = vector.extract_strided_slice %26 {offsets = [0, 1, 0], sizes = [4, 8, 128], strides = [1, 1, 1]} : vector<4x9x128xf32> to vector<4x8x128xf32>
    %44 = vector.extract_strided_slice %0 {offsets = [1, 2, 0], sizes = [1, 1, 128], strides = [1, 1, 1]} : vector<3x3x128xf32> to vector<1x1x128xf32>
    %45 = vector.shape_cast %44 : vector<1x1x128xf32> to vector<128xf32>
    %46 = vector.shape_cast %45 : vector<128xf32> to vector<1x1x128xf32>
    %47 = vector.broadcast %46 : vector<1x1x128xf32> to vector<4x8x128xf32>
    %48 = arith.mulf %43, %47 : vector<4x8x128xf32>
    %49 = arith.addf %42, %48 : vector<4x8x128xf32>
    %c0_15 = arith.constant 0 : index
    %c1 = arith.constant 1 : index
    %c0_16 = arith.constant 0 : index
    %c0_17 = arith.constant 0 : index
    %50 = vector.load %arg2[%c0_15, %c1, %c0_16, %c0_17] : memref<1x20x9x128xf32, #tpu.memory_space<vmem>>, vector<1x4x9x128xf32>
    %51 = vector.shape_cast %50 : vector<1x4x9x128xf32> to vector<4x9x128xf32>
    %52 = vector.extract_strided_slice %51 {offsets = [0, 0, 0], sizes = [4, 8, 128], strides = [1, 1, 1]} : vector<4x9x128xf32> to vector<4x8x128xf32>
    %53 = vector.extract_strided_slice %0 {offsets = [2, 0, 0], sizes = [1, 1, 128], strides = [1, 1, 1]} : vector<3x3x128xf32> to vector<1x1x128xf32>
    %54 = vector.shape_cast %53 : vector<1x1x128xf32> to vector<128xf32>
    %55 = vector.shape_cast %54 : vector<128xf32> to vector<1x1x128xf32>
    %56 = vector.broadcast %55 : vector<1x1x128xf32> to vector<4x8x128xf32>
    %57 = arith.mulf %52, %56 : vector<4x8x128xf32>
    %58 = arith.addf %49, %57 : vector<4x8x128xf32>
    %c0_18 = arith.constant 0 : index
    %c6 = arith.constant 6 : index
    %c0_19 = arith.constant 0 : index
    %c0_20 = arith.constant 0 : index
    %59 = vector.load %arg2[%c0_18, %c6, %c0_19, %c0_20] : memref<1x20x9x128xf32, #tpu.memory_space<vmem>>, vector<1x4x9x128xf32>
    %60 = vector.shape_cast %59 : vector<1x4x9x128xf32> to vector<4x9x128xf32>
    %61 = vector.extract_strided_slice %60 {offsets = [0, 0, 0], sizes = [4, 8, 128], strides = [1, 1, 1]} : vector<4x9x128xf32> to vector<4x8x128xf32>
    %62 = vector.extract_strided_slice %0 {offsets = [2, 1, 0], sizes = [1, 1, 128], strides = [1, 1, 1]} : vector<3x3x128xf32> to vector<1x1x128xf32>
    %63 = vector.shape_cast %62 : vector<1x1x128xf32> to vector<128xf32>
    %64 = vector.shape_cast %63 : vector<128xf32> to vector<1x1x128xf32>
    %65 = vector.broadcast %64 : vector<1x1x128xf32> to vector<4x8x128xf32>
    %66 = arith.mulf %61, %65 : vector<4x8x128xf32>
    %67 = arith.addf %58, %66 : vector<4x8x128xf32>
    %68 = vector.extract_strided_slice %51 {offsets = [0, 1, 0], sizes = [4, 8, 128], strides = [1, 1, 1]} : vector<4x9x128xf32> to vector<4x8x128xf32>
    %69 = vector.extract_strided_slice %0 {offsets = [2, 2, 0], sizes = [1, 1, 128], strides = [1, 1, 1]} : vector<3x3x128xf32> to vector<1x1x128xf32>
    %70 = vector.shape_cast %69 : vector<1x1x128xf32> to vector<128xf32>
    %71 = vector.shape_cast %70 : vector<128xf32> to vector<1x1x128xf32>
    %72 = vector.broadcast %71 : vector<1x1x128xf32> to vector<4x8x128xf32>
    %73 = arith.mulf %68, %72 : vector<4x8x128xf32>
    %74 = arith.addf %67, %73 : vector<4x8x128xf32>
    %c0_21 = arith.constant 0 : index
    %c0_22 = arith.constant 0 : index
    %75 = vector.load %arg4[%c0_21, %c0_22] : memref<1x128xf32, #tpu.memory_space<vmem>>, vector<1x128xf32>
    %76 = vector.shape_cast %75 : vector<1x128xf32> to vector<1x1x128xf32>
    %77 = vector.broadcast %76 : vector<1x1x128xf32> to vector<4x8x128xf32>
    %78 = arith.addf %74, %77 : vector<4x8x128xf32>
    %cst = arith.constant 0.000000e+00 : f32
    %cst_23 = arith.constant 6.000000e+00 : f32
    %79 = vector.broadcast %cst : f32 to vector<4x8x128xf32>
    %80 = arith.maximumf %79, %78 : vector<4x8x128xf32>
    %81 = vector.broadcast %cst_23 : f32 to vector<4x8x128xf32>
    %82 = arith.minimumf %81, %80 : vector<4x8x128xf32>
    %83 = vector.shape_cast %82 : vector<4x8x128xf32> to vector<32x128xf32>
    %84 = arith.truncf %83 : vector<32x128xf32> to vector<32x128xbf16>
    %c0_24 = arith.constant 0 : index
    %c0_25 = arith.constant 0 : index
    %85 = vector.load %arg5[%c0_24, %c0_25] : memref<128x128xbf16, #tpu.memory_space<vmem>>, vector<128x128xbf16>
    %cst_26 = arith.constant dense<0.000000e+00> : vector<32x128xf32>
    %86 = tpu.matmul %84, %85, %cst_26 {dimension_numbers = #tpu.dot_dimension_numbers<[1], [0], [0], [1], [0, 0, 1, 1], [], []>} : vector<32x128xbf16>, vector<128x128xbf16>, vector<32x128xf32> -> vector<32x128xf32>
    %c0_27 = arith.constant 0 : index
    %c0_28 = arith.constant 0 : index
    %87 = vector.load %arg6[%c0_27, %c0_28] : memref<1x128xf32, #tpu.memory_space<vmem>>, vector<1x128xf32>
    %88 = vector.broadcast %87 : vector<1x128xf32> to vector<32x128xf32>
    %89 = arith.addf %86, %88 : vector<32x128xf32>
    %cst_29 = arith.constant 0.000000e+00 : f32
    %cst_30 = arith.constant 6.000000e+00 : f32
    %90 = vector.broadcast %cst_29 : f32 to vector<32x128xf32>
    %91 = arith.maximumf %90, %89 : vector<32x128xf32>
    %92 = vector.broadcast %cst_30 : f32 to vector<32x128xf32>
    %93 = arith.minimumf %92, %91 : vector<32x128xf32>
    %c0_31 = arith.constant 0 : index
    %c0_32 = arith.constant 0 : index
    %c0_33 = arith.constant 0 : index
    %94 = vector.load %arg7[%c0_31, %c0_32, %c0_33] : memref<1x32x128xf32, #tpu.memory_space<vmem>>, vector<1x32x128xf32>
    %95 = vector.shape_cast %94 : vector<1x32x128xf32> to vector<32x128xf32>
    %96 = vector.shape_cast %93 : vector<32x128xf32> to vector<1x32x128xf32>
    tpu.vector_store %arg7[%c0_31, %c0_32, %c0_33], %96 {strides = array<i32>} : memref<1x32x128xf32, #tpu.memory_space<vmem>>, vector<1x32x128xf32>,
    return
  }
  func.func @transform_0(%arg0: i32, %arg1: i32) -> (i32, i32, i32, i32) {
    %c2_i32 = arith.constant 2 : i32
    %0 = arith.muli %arg0, %c2_i32 : i32
    %1 = arith.addi %0, %arg1 : i32
    %c0_i32 = arith.constant 0 : i32
    %c0_i32_0 = arith.constant 0 : i32
    %c0_i32_1 = arith.constant 0 : i32
    %c0_i32_2 = arith.constant 0 : i32
    return %1, %c0_i32, %c0_i32_0, %c0_i32_1 : i32, i32, i32, i32
  }
  func.func @transform_1(%arg0: i32, %arg1: i32) -> (i32, i32, i32) {
    %c0_i32 = arith.constant 0 : i32
    %c0_i32_0 = arith.constant 0 : i32
    %c0_i32_1 = arith.constant 0 : i32
    %c0_i32_2 = arith.constant 0 : i32
    return %c0_i32, %c0_i32_0, %c0_i32_1 : i32, i32, i32
  }
  func.func @transform_2(%arg0: i32, %arg1: i32) -> (i32, i32) {
    %c0_i32 = arith.constant 0 : i32
    %c0_i32_0 = arith.constant 0 : i32
    %c0_i32_1 = arith.constant 0 : i32
    return %c0_i32, %c0_i32_0 : i32, i32
  }
  func.func @transform_3(%arg0: i32, %arg1: i32) -> (i32, i32) {
    %c0_i32 = arith.constant 0 : i32
    %c0_i32_0 = arith.constant 0 : i32
    %c0_i32_1 = arith.constant 0 : i32
    return %c0_i32, %c0_i32_0 : i32, i32
  }
  func.func @transform_4(%arg0: i32, %arg1: i32) -> (i32, i32) {
    %c0_i32 = arith.constant 0 : i32
    %c0_i32_0 = arith.constant 0 : i32
    %c0_i32_1 = arith.constant 0 : i32
    return %c0_i32, %c0_i32_0 : i32, i32
  }
  func.func @transform_5(%arg0: i32, %arg1: i32) -> (i32, i32, i32) {
    %c0_i32 = arith.constant 0 : i32
    %c0_i32_0 = arith.constant 0 : i32
    return %arg0, %arg1, %c0_i32 : i32, i32, i32
  }
}

</mosaic_0001>

<llo_original>
// kernel: tpu_custom_call.1
$region0: #{tpu_custom_call.1}
  #allocation0 [shape = 'u32[]', space=smem, size = 0x4, offset = 0x4, fixed_abs, tag = 'smem constant byte address 0x4 - core index']
  #allocation1 [shape = 'u32[144,128]{1,0:T(1,128)}', space=vmem, size = 0x12000, scoped, tag = 'internal scratch']
  %s0 = inlined_call_operand.vmem [shape: f32[4,20,9,128], index: 0, kind: input, shape index: {}]
  %s1 = inlined_call_operand.vmem [shape: f32[3,3,128], index: 1, kind: input, shape index: {}]
  %s2 = inlined_call_operand.vmem [shape: f32[1,128], index: 2, kind: input, shape index: {}]
  %s3 = inlined_call_operand.vmem [shape: bf16[128,128], index: 3, kind: input, shape index: {}]
  %s4 = inlined_call_operand.vmem [shape: f32[1,128], index: 4, kind: input, shape index: {}]
  %s5 = inlined_call_operand.hbm [shape: f32[2,64,128], index: 5, kind: output, shape index: {}]
  %s6 = sld [smem:[#allocation0]]
  $region53: #{tpu_custom_call.1} parent=0
    _
  %s8 = ssub.s32 1, %s6
  %s9 = scalar_select 0, %s8, %s6
  $region1: #{tpu_custom_call.1} parent=0
    #allocation2 [shape = 'u8[32768]{0}', space=vmem, size = 0x8000, scoped, tag = 'output window, operand 0']
    #allocation3 [shape = 's32[2]{0}', space=sflag, size = 0x8, scoped, tag = 'scoped memory for tpu_custom_call.1']
    %10 = vsyncpa [#allocation3], 0
    %s11 = scalar_lea.sflag [#allocation3], 1
    %12 = vsyncpa %s11, 0
    loop: start=0, step=1, limit=6
    $region2: #{tpu_custom_call.1} parent=1 // loop_pre_header
      _
    $region3: #{tpu_custom_call.1} parent=1 // loop_header
      %s14 = sphi 0, %s18
      %p15 = scmp.ge.s32.totalorder %s14, 6
      %s21 = sphi 0, %s33
      %s22 = sphi 0, %s29
      %s23 = sphi 0, %s21
      %s24 = sphi 0, %s22
      %s25 = sphi 0, %s23
      %s26 = sphi 0, %s24
      %s40 = sphi 0, %s42
      %s43 = sphi 0, %s40
      %s44 = sphi 0, %s43
      %s60 = sphi 0, %s44
      %s64 = sphi 0, %s64
      %s66 = sphi 0, %s64
      %s67 = sphi 0, %s66
      %s81 = sphi 0, %s67
      %s85 = sphi 0, %s85
      %s87 = sphi 0, %s85
      %s88 = sphi 0, %s87
      %s102 = sphi 0, %s88
      %s106 = sphi 0, %s106
      %s108 = sphi 0, %s106
      %s109 = sphi 0, %s108
      %s123 = sphi 0, %s109
      %s127 = sphi 0, %s127
      %s129 = sphi 0, %s127
      %s130 = sphi 0, %s129
      %s144 = sphi 0, %s130
      %s152 = sphi 0, %s154
      %s155 = sphi 0, %s152
      %s156 = sphi 0, %s155
      %s172 = sphi 0, %s156
    $region4: #{tpu_custom_call.1} parent=1 // loop_header_branch
      %17 = sbr.rel (%p15) target = $region8
    $region5: #{tpu_custom_call.1} parent=1 // loop_body
      %s19 = ssub.s32 %s14, 1
      %s20 = ssub.s32 %s14, 2
      %s27 = sadd.s32 1, %s22
      %p28 = scmp.ge.s32.totalorder %s27, 2
      %s29 = scalar_select %p28, 0, %s27
      %s30 = sadd.s32 1, %s21
      %s31 = scalar_select %p28, %s30, %s21
      %p32 = scmp.ge.s32.totalorder %s31, 2
      %s33 = scalar_select %p32, 0, %s31
      %s34 = smul.u32 %s21, 2
      %s35 = sadd.s32 %s34, %s22
      %s36 = smul.u32 %s33, 2
      %s37 = sadd.s32 %s36, %s29
      %s38 = ssub.s32 %s35, %s37
      %p39 = scmp.eq.s32.totalorder %s38, 0
      %s41 = sadd.s32 %s40, 1
      %s42 = scalar_select %p39, %s40, %s41
      %p45 = pneg %p39
      %p46 = scmp.eq.s32.totalorder %s14, 3
      %p47 = por %p45, %p46
      %p48 = scmp.ne.s32.totalorder %s40, %s43
      %p49 = scmp.eq.s32.totalorder %s14, 0
      %p50 = por %p48, %p49
      %p51 = scmp.ne.s32.totalorder %s40, %s43
      %p52 = scmp.eq.s32.totalorder %s19, 3
      %p53 = por %p51, %p52
      %p54 = scmp.ne.s32.totalorder %s43, %s44
      %p55 = scmp.eq.s32.totalorder %s19, 0
      %p56 = por %p54, %p55
      %p57 = scmp.ne.s32.totalorder %s43, %s44
      %p58 = scmp.eq.s32.totalorder %s20, 3
      %p59 = por %p57, %p58
      %p61 = scmp.ne.s32.totalorder %s44, %s60
      %p62 = scmp.eq.s32.totalorder %s20, 0
      %p63 = por %p61, %p62
      %s65 = sadd.s32 %s64, 1
      %p68 = scmp.eq.s32.totalorder %s14, 3
      %p69 = scmp.ne.s32.totalorder %s64, %s66
      %p70 = scmp.eq.s32.totalorder %s14, 0
      %p71 = por %p69, %p70
      %p72 = scmp.ne.s32.totalorder %s64, %s66
      %p73 = scmp.eq.s32.totalorder %s19, 3
      %p74 = por %p72, %p73
      %p75 = scmp.ne.s32.totalorder %s66, %s67
      %p76 = scmp.eq.s32.totalorder %s19, 0
      %p77 = por %p75, %p76
      %p78 = scmp.ne.s32.totalorder %s66, %s67
      %p79 = scmp.eq.s32.totalorder %s20, 3
      %p80 = por %p78, %p79
      %p82 = scmp.ne.s32.totalorder %s67, %s81
      %p83 = scmp.eq.s32.totalorder %s20, 0
      %p84 = por %p82, %p83
      %s86 = sadd.s32 %s85, 1
      %p89 = scmp.eq.s32.totalorder %s14, 3
      %p90 = scmp.ne.s32.totalorder %s85, %s87
      %p91 = scmp.eq.s32.totalorder %s14, 0
      %p92 = por %p90, %p91
      %p93 = scmp.ne.s32.totalorder %s85, %s87
      %p94 = scmp.eq.s32.totalorder %s19, 3
      %p95 = por %p93, %p94
      %p96 = scmp.ne.s32.totalorder %s87, %s88
      %p97 = scmp.eq.s32.totalorder %s19, 0
      %p98 = por %p96, %p97
      %p99 = scmp.ne.s32.totalorder %s87, %s88
      %p100 = scmp.eq.s32.totalorder %s20, 3
      %p101 = por %p99, %p100
      %p103 = scmp.ne.s32.totalorder %s88, %s102
      %p104 = scmp.eq.s32.totalorder %s20, 0
      %p105 = por %p103, %p104
      %s107 = sadd.s32 %s106, 1
      %p110 = scmp.eq.s32.totalorder %s14, 3
      %p111 = scmp.ne.s32.totalorder %s106, %s108
      %p112 = scmp.eq.s32.totalorder %s14, 0
      %p113 = por %p111, %p112
      %p114 = scmp.ne.s32.totalorder %s106, %s108
      %p115 = scmp.eq.s32.totalorder %s19, 3
      %p116 = por %p114, %p115
      %p117 = scmp.ne.s32.totalorder %s108, %s109
      %p118 = scmp.eq.s32.totalorder %s19, 0
      %p119 = por %p117, %p118
      %p120 = scmp.ne.s32.totalorder %s108, %s109
      %p121 = scmp.eq.s32.totalorder %s20, 3
      %p122 = por %p120, %p121
      %p124 = scmp.ne.s32.totalorder %s109, %s123
      %p125 = scmp.eq.s32.totalorder %s20, 0
      %p126 = por %p124, %p125
      %s128 = sadd.s32 %s127, 1
      %p131 = scmp.eq.s32.totalorder %s14, 3
      %p132 = scmp.ne.s32.totalorder %s127, %s129
      %p133 = scmp.eq.s32.totalorder %s14, 0
      %p134 = por %p132, %p133
      %p135 = scmp.ne.s32.totalorder %s127, %s129
      %p136 = scmp.eq.s32.totalorder %s19, 3
      %p137 = por %p135, %p136
      %p138 = scmp.ne.s32.totalorder %s129, %s130
      %p139 = scmp.eq.s32.totalorder %s19, 0
      %p140 = por %p138, %p139
      %p141 = scmp.ne.s32.totalorder %s129, %s130
      %p142 = scmp.eq.s32.totalorder %s20, 3
      %p143 = por %p141, %p142
      %p145 = scmp.ne.s32.totalorder %s130, %s144
      %p146 = scmp.eq.s32.totalorder %s20, 0
      %p147 = por %p145, %p146
      %s148 = ssub.s32 %s21, %s33
      %s149 = ssub.s32 %s22, %s29
      %s150 = sor.u32 %s148, %s149
      %p151 = scmp.eq.s32.totalorder %s150, 0
      %s153 = sadd.s32 %s152, 1
      %s154 = scalar_select %p151, %s152, %s153
      %p157 = pneg %p151
      %p158 = scmp.eq.s32.totalorder %s14, 3
      %p159 = por %p157, %p158
      %p160 = scmp.ne.s32.totalorder %s152, %s155
      %p161 = scmp.eq.s32.totalorder %s14, 0
      %p162 = por %p160, %p161
      %p163 = scmp.ne.s32.totalorder %s152, %s155
      %p164 = scmp.eq.s32.totalorder %s19, 3
      %p165 = por %p163, %p164
      %p166 = scmp.ne.s32.totalorder %s155, %s156
      %p167 = scmp.eq.s32.totalorder %s19, 0
      %p168 = por %p166, %p167
      %p169 = scmp.ne.s32.totalorder %s155, %s156
      %p170 = scmp.eq.s32.totalorder %s20, 3
      %p171 = por %p169, %p170
      %p173 = scmp.ne.s32.totalorder %s156, %s172
      %p174 = scmp.eq.s32.totalorder %s20, 0
      %p175 = por %p173, %p174
      %p176 = scmp.le.s32.totalorder 1, %s14
      %p177 = scmp.lt.s32.totalorder %s14, 5
      %p178 = pnand %p176, %p177
      %p179 = pneg %p178
      // Predicated region
      $region9: #{tpu_custom_call.1} parent=5 // pred_check
        _
      $region10: #{tpu_custom_call.1} parent=5 // pred_check_branch
        %181 = sbr.rel (%p178) target = $region12
      $region11: #{tpu_custom_call.1} parent=5 // pred_region
        %s182 = ssub.s32 %s14, 1
        // Predicated region
        $region13: #{tpu_custom_call.1} parent=11 // pred_check
          %p183 = pneg %p77
        $region14: #{tpu_custom_call.1} parent=11 // pred_check_branch
          %185 = sbr.rel (%p183) target = $region16
        $region15: #{tpu_custom_call.1} parent=11 // pred_region
          _
        $region16: #{tpu_custom_call.1} parent=11 // pred_fallthru
          _
        // Predicated region
        $region17: #{tpu_custom_call.1} parent=11 // pred_check
          %p186 = pneg %p98
        $region18: #{tpu_custom_call.1} parent=11 // pred_check_branch
          %188 = sbr.rel (%p186) target = $region20
        $region19: #{tpu_custom_call.1} parent=11 // pred_region
          _
        $region20: #{tpu_custom_call.1} parent=11 // pred_fallthru
          _
        // Predicated region
        $region21: #{tpu_custom_call.1} parent=11 // pred_check
          %p189 = pneg %p119
        $region22: #{tpu_custom_call.1} parent=11 // pred_check_branch
          %191 = sbr.rel (%p189) target = $region24
        $region23: #{tpu_custom_call.1} parent=11 // pred_region
          _
        $region24: #{tpu_custom_call.1} parent=11 // pred_fallthru
          _
        // Predicated region
        $region25: #{tpu_custom_call.1} parent=11 // pred_check
          %p192 = pneg %p140
        $region26: #{tpu_custom_call.1} parent=11 // pred_check_branch
          %194 = sbr.rel (%p192) target = $region28
        $region27: #{tpu_custom_call.1} parent=11 // pred_region
          _
        $region28: #{tpu_custom_call.1} parent=11 // pred_fallthru
          _
      $region12: #{tpu_custom_call.1} parent=5 // pred_fallthru
        _
      %p195 = scmp.lt.s32.totalorder %s14, 4
      // Predicated region
      $region29: #{tpu_custom_call.1} parent=5 // pred_check
        %p196 = pneg %p195
      $region30: #{tpu_custom_call.1} parent=5 // pred_check_branch
        %198 = sbr.rel (%p196) target = $region32
      $region31: #{tpu_custom_call.1} parent=5 // pred_region
        // Predicated region
        $region33: #{tpu_custom_call.1} parent=31 // pred_check
          %p199 = pneg %p50
        $region34: #{tpu_custom_call.1} parent=31 // pred_check_branch
          %201 = sbr.rel (%p199) target = $region36
        $region35: #{tpu_custom_call.1} parent=31 // pred_region
          %s202 = smul.u32 %s21, 2
          %s203 = sadd.s32 %s202, %s22
          %p204 = scmp.lt.s32.totalorder %s203, 3
          %s205 = scalar_select %p204, %s203, 3
          %s206 = smul.addr %s205, 40
          %s207 = smul.addr %s206, 8
          %s208 = scalar_lea.vmem %s0, %s207
          %s209 = smul.u32 %s21, 2
          %s210 = sadd.s32 %s209, %s22
        $region36: #{tpu_custom_call.1} parent=31 // pred_fallthru
          _
      $region32: #{tpu_custom_call.1} parent=5 // pred_fallthru
        _
      %p211 = scmp.le.s32.totalorder 1, %s14
      %p212 = scmp.lt.s32.totalorder %s14, 5
      %p213 = pnand %p211, %p212
      %p214 = pneg %p213
      // Predicated region
      $region37: #{tpu_custom_call.1} parent=5 // pred_check
        _
      $region38: #{tpu_custom_call.1} parent=5 // pred_check_branch
        %216 = sbr.rel (%p213) target = $region40
      $region39: #{tpu_custom_call.1} parent=5 // pred_region
        %s217 = ssub.s32 %s14, 1
        %s218 = smul.u32 %s23, 2
        %s219 = sadd.s32 %s218, %s24
        %p220 = scmp.lt.s32.totalorder %s219, 3
        %s221 = scalar_select %p220, %s219, 3
        %s222 = smul.addr %s221, 40
        %s223 = smul.addr %s222, 8
        %s224 = scalar_lea.vmem %s0, %s223
        %p225 = pneg %p56
        %p226 = pneg %p53
        %p227 = pneg %p77
        %p228 = pneg %p74
        %p229 = pneg %p98
        %p230 = pneg %p95
        %p231 = pneg %p119
        %p232 = pneg %p116
        %p233 = pneg %p140
        %p234 = pneg %p137
        %p235 = pneg %p168
        %p236 = pneg %p165
        %s237 = sand.u32 %s155, 1
        %s238 = scalar_lea.sflag [#allocation3], %s237
        %s239 = sand.u32 %s155, 1
        %s240 = smul.addr %s239, 32
        %s241 = scalar_lea.vmem [#allocation2], %s240
        %s242 = smul.u32 %s23, 2
        %s243 = sadd.s32 %s242, %s24
        %p244 = scmp.lt.s32.totalorder %s243, 3
        %s245 = scalar_select %p244, %s243, 3
        %s246 = smul.addr %s245, 40
        %s247 = smul.addr %s246, 8
        %s248 = scalar_lea.vmem %s0, %s247
        %s249 = smul.u32 %s23, 2
        %s250 = sadd.s32 %s249, %s24
        %s251 = smul.u32 4, %s24
        %v253 = vld [vmem:[%s1] sm:$0x7]
        %v254 = vld [vmem:[%s1 + $0x4] sm:$0x7]
        %v255 = vld [vmem:[%s1 + $0x8] sm:$0x7]
        %v256 = vld [vmem:[%s248] sm:$0xff]
        %v257 = vld [vmem:[%s248 + $0x8] sm:$0x1]
        %v258 = vld [vmem:[%s248 + $0x10] sm:$0xff]
        %v259 = vld [vmem:[%s248 + $0x18] sm:$0x1]
        %v260 = vld [vmem:[%s248 + $0x20] sm:$0xff]
        %v261 = vld [vmem:[%s248 + $0x28] sm:$0x1]
        %v262 = vld [vmem:[%s248 + $0x30] sm:$0xff]
        %v263 = vld [vmem:[%s248 + $0x38] sm:$0x1]
        %v264 = vlaneseq
        %v265 = vshrl.u32 %v264, 7
        %v266 = vsub.s32 0, %v265
        %v267 = vrot.slane %v253, %v266
        %v268 = vmul.f32 %v256, %v267
        %v269 = vmul.f32 %v258, %v267
        %v270 = vmul.f32 %v260, %v267
        %v271 = vmul.f32 %v262, %v267
        %s272 = scalar_lea.vmem %s248, 80
        %v273 = vld [vmem:[%s272] sm:$0xff]
        %v274 = vld [vmem:[%s272 + $0x10] sm:$0xff]
        %v275 = vld [vmem:[%s272 + $0x20] sm:$0xff]
        %v276 = vld [vmem:[%s272 + $0x30] sm:$0xff]
        %v277 = vlaneseq
        %v278 = vshrl.u32 %v277, 7
        %v279 = vsub.s32 1, %v278
        %v280 = vrot.slane %v253, %v279
        %v281 = vmul.f32 %v273, %v280
        %v282 = vmul.f32 %v274, %v280
        %v283 = vmul.f32 %v275, %v280
        %v284 = vmul.f32 %v276, %v280
        %v285 = vadd.f32 %v268, %v281
        %v286 = vadd.f32 %v269, %v282
        %v287 = vadd.f32 %v270, %v283
        %v288 = vadd.f32 %v271, %v284
        %v289 = vlaneseq
        %v290 = vshrl.u32 %v289, 7
        %v291 = vsub.s32 2, %v290
        %v292 = vrot.slane %v253, %v291
        %v293 = vmul.f32 %v256, %v292
        %v294 = vmul.f32 %v257, %v292
        %v295 = vmul.f32 %v258, %v292
        %v296 = vmul.f32 %v259, %v292
        %v297 = vmul.f32 %v260, %v292
        %v298 = vmul.f32 %v261, %v292
        %v299 = vmul.f32 %v262, %v292
        %v300 = vmul.f32 %v263, %v292
        %vm309 = vcmask 1046528
        %v310 = vrot.slane %v293, 1
        %v311 = vrot.slane %v294, 1
        %v312 = vsel %vm309, %v310, %v311
        %v313 = vrot.slane %v295, 1
        %v314 = vrot.slane %v296, 1
        %v315 = vsel %vm309, %v313, %v314
        %v316 = vrot.slane %v297, 1
        %v317 = vrot.slane %v298, 1
        %v318 = vsel %vm309, %v316, %v317
        %v319 = vrot.slane %v299, 1
        %v320 = vrot.slane %v300, 1
        %v321 = vsel %vm309, %v319, %v320
        %v326 = vadd.f32 %v285, %v312
        %v327 = vadd.f32 %v286, %v315
        %v328 = vadd.f32 %v287, %v318
        %v329 = vadd.f32 %v288, %v321
        %s330 = scalar_lea.vmem %s248, 160
        %v331 = vld [vmem:[%s330] sm:$0xff]
        %v332 = vld [vmem:[%s330 + $0x8] sm:$0x1]
        %v333 = vld [vmem:[%s330 + $0x10] sm:$0xff]
        %v334 = vld [vmem:[%s330 + $0x18] sm:$0x1]
        %v335 = vld [vmem:[%s330 + $0x20] sm:$0xff]
        %v336 = vld [vmem:[%s330 + $0x28] sm:$0x1]
        %v337 = vld [vmem:[%s330 + $0x30] sm:$0xff]
        %v338 = vld [vmem:[%s330 + $0x38] sm:$0x1]
        %v339 = vlaneseq
        %v340 = vshrl.u32 %v339, 7
        %v341 = vsub.s32 0, %v340
        %v342 = vrot.slane %v254, %v341
        %v343 = vmul.f32 %v331, %v342
        %v344 = vmul.f32 %v333, %v342
        %v345 = vmul.f32 %v335, %v342
        %v346 = vmul.f32 %v337, %v342
        %v347 = vadd.f32 %v326, %v343
        %v348 = vadd.f32 %v327, %v344
        %v349 = vadd.f32 %v328, %v345
        %v350 = vadd.f32 %v329, %v346
        %s351 = scalar_lea.vmem %s248, 240
        %v352 = vld [vmem:[%s351] sm:$0xff]
        %v353 = vld [vmem:[%s351 + $0x10] sm:$0xff]
        %v354 = vld [vmem:[%s351 + $0x20] sm:$0xff]
        %v355 = vld [vmem:[%s351 + $0x30] sm:$0xff]
        %v356 = vlaneseq
        %v357 = vshrl.u32 %v356, 7
        %v358 = vsub.s32 1, %v357
        %v359 = vrot.slane %v254, %v358
        %v360 = vmul.f32 %v352, %v359
        %v361 = vmul.f32 %v353, %v359
        %v362 = vmul.f32 %v354, %v359
        %v363 = vmul.f32 %v355, %v359
        %v364 = vadd.f32 %v347, %v360
        %v365 = vadd.f32 %v348, %v361
        %v366 = vadd.f32 %v349, %v362
        %v367 = vadd.f32 %v350, %v363
        %v368 = vlaneseq
        %v369 = vshrl.u32 %v368, 7
        %v370 = vsub.s32 2, %v369
        %v371 = vrot.slane %v254, %v370
        %v372 = vmul.f32 %v331, %v371
        %v373 = vmul.f32 %v332, %v371
        %v374 = vmul.f32 %v333, %v371
        %v375 = vmul.f32 %v334, %v371
        %v376 = vmul.f32 %v335, %v371
        %v377 = vmul.f32 %v336, %v371
        %v378 = vmul.f32 %v337, %v371
        %v379 = vmul.f32 %v338, %v371
        %v388 = vrot.slane %v372, 1
        %v389 = vrot.slane %v373, 1
        %v390 = vsel %vm309, %v388, %v389
        %v391 = vrot.slane %v374, 1
        %v392 = vrot.slane %v375, 1
        %v393 = vsel %vm309, %v391, %v392
        %v394 = vrot.slane %v376, 1
        %v395 = vrot.slane %v377, 1
        %v396 = vsel %vm309, %v394, %v395
        %v397 = vrot.slane %v378, 1
        %v398 = vrot.slane %v379, 1
        %v399 = vsel %vm309, %v397, %v398
        %v404 = vadd.f32 %v364, %v390
        %v405 = vadd.f32 %v365, %v393
        %v406 = vadd.f32 %v366, %v396
        %v407 = vadd.f32 %v367, %v399
        %s408 = scalar_lea.vmem %s248, 16
        %v409 = vld [vmem:[%s408] sm:$0xff]
        %v410 = vld [vmem:[%s408 + $0x8] sm:$0x1]
        %v411 = vld [vmem:[%s408 + $0x10] sm:$0xff]
        %v412 = vld [vmem:[%s408 + $0x18] sm:$0x1]
        %v413 = vld [vmem:[%s408 + $0x20] sm:$0xff]
        %v414 = vld [vmem:[%s408 + $0x28] sm:$0x1]
        %v415 = vld [vmem:[%s408 + $0x30] sm:$0xff]
        %v416 = vld [vmem:[%s408 + $0x38] sm:$0x1]
        %v417 = vlaneseq
        %v418 = vshrl.u32 %v417, 7
        %v419 = vsub.s32 0, %v418
        %v420 = vrot.slane %v255, %v419
        %v421 = vmul.f32 %v409, %v420
        %v422 = vmul.f32 %v411, %v420
        %v423 = vmul.f32 %v413, %v420
        %v424 = vmul.f32 %v415, %v420
        %v425 = vadd.f32 %v404, %v421
        %v426 = vadd.f32 %v405, %v422
        %v427 = vadd.f32 %v406, %v423
        %v428 = vadd.f32 %v407, %v424
        %s429 = scalar_lea.vmem %s248, 96
        %v430 = vld [vmem:[%s429] sm:$0xff]
        %v431 = vld [vmem:[%s429 + $0x10] sm:$0xff]
        %v432 = vld [vmem:[%s429 + $0x20] sm:$0xff]
        %v433 = vld [vmem:[%s429 + $0x30] sm:$0xff]
        %v434 = vlaneseq
        %v435 = vshrl.u32 %v434, 7
        %v436 = vsub.s32 1, %v435
        %v437 = vrot.slane %v255, %v436
        %v438 = vmul.f32 %v430, %v437
        %v439 = vmul.f32 %v431, %v437
        %v440 = vmul.f32 %v432, %v437
        %v441 = vmul.f32 %v433, %v437
        %v442 = vadd.f32 %v425, %v438
        %v443 = vadd.f32 %v426, %v439
        %v444 = vadd.f32 %v427, %v440
        %v445 = vadd.f32 %v428, %v441
        %v446 = vlaneseq
        %v447 = vshrl.u32 %v446, 7
        %v448 = vsub.s32 2, %v447
        %v449 = vrot.slane %v255, %v448
        %v450 = vmul.f32 %v409, %v449
        %v451 = vmul.f32 %v410, %v449
        %v452 = vmul.f32 %v411, %v449
        %v453 = vmul.f32 %v412, %v449
        %v454 = vmul.f32 %v413, %v449
        %v455 = vmul.f32 %v414, %v449
        %v456 = vmul.f32 %v415, %v449
        %v457 = vmul.f32 %v416, %v449
        %v466 = vrot.slane %v450, 1
        %v467 = vrot.slane %v451, 1
        %v468 = vsel %vm309, %v466, %v467
        %v469 = vrot.slane %v452, 1
        %v470 = vrot.slane %v453, 1
        %v471 = vsel %vm309, %v469, %v470
        %v472 = vrot.slane %v454, 1
        %v473 = vrot.slane %v455, 1
        %v474 = vsel %vm309, %v472, %v473
        %v475 = vrot.slane %v456, 1
        %v476 = vrot.slane %v457, 1
        %v477 = vsel %vm309, %v475, %v476
        %v482 = vadd.f32 %v442, %v468
        %v483 = vadd.f32 %v443, %v471
        %v484 = vadd.f32 %v444, %v474
        %v485 = vadd.f32 %v445, %v477
        %v486 = vld [vmem:[%s2] sm:$0x1]
        %v488 = vlaneseq
        %v489 = vshrl.u32 %v488, 7
        %v490 = vsub.s32 0, %v489
        %v491 = vrot.slane %v486, %v490
        %v493 = vadd.f32 %v482, %v491
        %v494 = vadd.f32 %v483, %v491
        %v495 = vadd.f32 %v484, %v491
        %v496 = vadd.f32 %v485, %v491
        %v497 = vmax.f32 %v493, 0.0
        %v498 = vmax.f32 %v494, 0.0
        %v499 = vmax.f32 %v495, 0.0
        %v500 = vmax.f32 %v496, 0.0
        %v501 = vmin.f32 %v497, 6.0
        %v502 = vmin.f32 %v498, 6.0
        %v503 = vmin.f32 %v499, 6.0
        %v504 = vmin.f32 %v500, 6.0
        %v505 = vpack.c.bf16 %v502, %v501
        %v506 = vpack.c.bf16 %v504, %v503
        %v507 = vld [vmem:[%s3] sm:$0xf]
        %v508 = vld [vmem:[%s3 + $0x4] sm:$0xf]
        %v509 = vld [vmem:[%s3 + $0x8] sm:$0xf]
        %v510 = vld [vmem:[%s3 + $0xc] sm:$0xf]
        %v511 = vld [vmem:[%s3 + $0x10] sm:$0xf]
        %v512 = vld [vmem:[%s3 + $0x14] sm:$0xf]
        %v513 = vld [vmem:[%s3 + $0x18] sm:$0xf]
        %v514 = vld [vmem:[%s3 + $0x1c] sm:$0xf]
        %v515 = vld [vmem:[%s3 + $0x20] sm:$0xf]
        %v516 = vld [vmem:[%s3 + $0x24] sm:$0xf]
        %v517 = vld [vmem:[%s3 + $0x28] sm:$0xf]
        %v518 = vld [vmem:[%s3 + $0x2c] sm:$0xf]
        %v519 = vld [vmem:[%s3 + $0x30] sm:$0xf]
        %v520 = vld [vmem:[%s3 + $0x34] sm:$0xf]
        %v521 = vld [vmem:[%s3 + $0x38] sm:$0xf]
        %v522 = vld [vmem:[%s3 + $0x3c] sm:$0xf]
        %v523 = vld [vmem:[%s4] sm:$0x1]
        %v525 = vlaneseq
        %v526 = vshrl.u32 %v525, 7
        %v527 = vsub.s32 0, %v526
        %v528 = vrot.slane %v523, %v527
        %v546 = vunpack.c.l.b16 %v507
        %v547 = vunpack.c.l.b16 %v508
        %v548 = vunpack.c.l.b16 %v509
        %v549 = vunpack.c.l.b16 %v510
        %v550 = vunpack.c.l.b16 %v511
        %v551 = vunpack.c.l.b16 %v512
        %v552 = vunpack.c.l.b16 %v513
        %v553 = vunpack.c.l.b16 %v514
        %v554 = vunpack.c.l.b16 %v515
        %v555 = vunpack.c.l.b16 %v516
        %v556 = vunpack.c.l.b16 %v517
        %v557 = vunpack.c.l.b16 %v518
        %v558 = vunpack.c.l.b16 %v519
        %v559 = vunpack.c.l.b16 %v520
        %v560 = vunpack.c.l.b16 %v521
        %v561 = vunpack.c.l.b16 %v522
        %v562 = vpack.c.b16 %v547, %v546
        %v563 = vpack.c.b16 %v549, %v548
        %v564 = vpack.c.b16 %v551, %v550
        %v565 = vpack.c.b16 %v553, %v552
        %v566 = vpack.c.b16 %v555, %v554
        %v567 = vpack.c.b16 %v557, %v556
        %v568 = vpack.c.b16 %v559, %v558
        %v569 = vpack.c.b16 %v561, %v560
        %578 = vmatprep.subr.bf16.mxu0 0
        %579 = vmatpush1.bf16.msra.mxu0 %v569
        %580 = vmatprep.subr.bf16.mxu0 0
        %581 = vmatpush1.bf16.msra.mxu0 %v568
        %582 = vmatprep.subr.bf16.mxu0 0
        %583 = vmatpush1.bf16.msra.mxu0 %v567
        %584 = vmatprep.subr.bf16.mxu0 0
        %585 = vmatpush1.bf16.msra.mxu0 %v566
        %586 = vmatprep.subr.bf16.mxu0 0
        %587 = vmatpush1.bf16.msra.mxu0 %v565
        %588 = vmatprep.subr.bf16.mxu0 0
        %589 = vmatpush1.bf16.msra.mxu0 %v564
        %590 = vmatprep.subr.bf16.mxu0 0
        %591 = vmatpush1.bf16.msra.mxu0 %v563
        %592 = vmatprep.subr.bf16.mxu0 0
        %593 = vmatpush1.bf16.msra.mxu0 %v562
        %594 = vmatprep.subr.bf16.mxu0 0
        %595 = vmatpush2.bf16.msra.mxu0 0
        %596 = vmatprep.subr.bf16.mxu0 0
        %597 = vmatpush2.bf16.msra.mxu0 0
        %598 = vmatprep.subr.bf16.mxu0 0
        %599 = vmatpush2.bf16.msra.mxu0 0
        %600 = vmatprep.subr.bf16.mxu0 0
        %601 = vmatpush2.bf16.msra.mxu0 0
        %602 = vmatprep.subr.bf16.mxu0 0
        %603 = vmatpush2.bf16.msra.mxu0 0
        %604 = vmatprep.subr.bf16.mxu0 0
        %605 = vmatpush2.bf16.msra.mxu0 0
        %606 = vmatprep.subr.bf16.mxu0 0
        %607 = vmatpush2.bf16.msra.mxu0 0
        %608 = vmatprep.subr.bf16.mxu0 0
        %609 = vmatpush2.bf16.msra.mxu0 0
        %610 = vmatprep.mubr.bf16.mxu0 0
        %611 = vmatmul.mubr.bf16.gmra.mxu0 %v505
        %v612 = vpop.f32.mrf.mxu0
        %v613 = vadd.f32 %v528, %v612
        %v614 = vpop.f32.mrf.mxu0
        %v615 = vpop.f32.mrf.mxu0
        %v616 = vadd.f32 %v528, %v615
        %v617 = vpop.f32.mrf.mxu0
        %618 = vmatprep.mubr.bf16.mxu0 0
        %619 = vmatmul.mubr.bf16.gmra.mxu0 %v506
        %v620 = vpop.f32.mrf.mxu0
        %v621 = vadd.f32 %v528, %v620
        %v622 = vpop.f32.mrf.mxu0
        %v623 = vpop.f32.mrf.mxu0
        %v624 = vadd.f32 %v528, %v623
        %v625 = vpop.f32.mrf.mxu0
        %626 = vdwg.mxu0
        %v627 = vmax.f32 %v613, 0.0
        %v628 = vmax.f32 %v616, 0.0
        %v629 = vmax.f32 %v621, 0.0
        %v630 = vmax.f32 %v624, 0.0
        %v631 = vmin.f32 %v627, 6.0
        %v632 = vmin.f32 %v628, 6.0
        %v633 = vmin.f32 %v629, 6.0
        %v634 = vmin.f32 %v630, 6.0
        %635 = vst [vmem:[%s241] sm:$0xff] %v631
        %636 = vst [vmem:[%s241 + $0x8] sm:$0xff] %v632
        %637 = vst [vmem:[%s241 + $0x10] sm:$0xff] %v633
        %638 = vst [vmem:[%s241 + $0x18] sm:$0xff] %v634
        %s639 = sand.u32 %s155, 1
        %s640 = scalar_lea.sflag [#allocation3], %s639
        %s641 = sand.u32 %s155, 1
        %s642 = smul.addr %s641, 32
        %s643 = scalar_lea.vmem [#allocation2], %s642
        // Predicated region
        $region41: #{tpu_custom_call.1} parent=39 // pred_check
          %p644 = pneg %p165
        $region42: #{tpu_custom_call.1} parent=39 // pred_check_branch
          %646 = sbr.rel (%p644) target = $region44
        $region43: #{tpu_custom_call.1} parent=39 // pred_region
          %s647 = smul.u32 4, %s24
          %s649 = ssub.s32 512, 512
          %650 = vsyncadd %s640, %s649
          %s651 = smul.addr %s23, 8
          %s652 = sadd.s32 %s647, %s651
          %s653 = smul.addr %s652, 128
          %s654 = scalar_lea.hbm %s5, %s653
          %s655 = sshll.u32 %s643, 4
          %s656 = int_to_ptr.vmem [resolvable:$true] %s655
          %661 = dma.vmem_to_hbm [thread:$0]  %s656, 512, %s654, %s640, 128, 128, 8
        $region44: #{tpu_custom_call.1} parent=39 // pred_fallthru
          _
      $region40: #{tpu_custom_call.1} parent=5 // pred_fallthru
        _
      %p662 = scmp.le.s32.totalorder 2, %s14
      // Predicated region
      $region45: #{tpu_custom_call.1} parent=5 // pred_check
        %p663 = pneg %p662
      $region46: #{tpu_custom_call.1} parent=5 // pred_check_branch
        %665 = sbr.rel (%p663) target = $region48
      $region47: #{tpu_custom_call.1} parent=5 // pred_region
        %s666 = ssub.s32 %s14, 2
        // Predicated region
        $region49: #{tpu_custom_call.1} parent=47 // pred_check
          %p667 = pneg %p171
        $region50: #{tpu_custom_call.1} parent=47 // pred_check_branch
          %669 = sbr.rel (%p667) target = $region52
        $region51: #{tpu_custom_call.1} parent=47 // pred_region
          %s670 = sand.u32 %s156, 1
          %s671 = scalar_lea.sflag [#allocation3], %s670
          %s672 = sand.u32 %s156, 1
          %s673 = smul.addr %s672, 32
          %s674 = scalar_lea.vmem [#allocation2], %s673
          %675 = dma.done %s671, 512
        $region52: #{tpu_custom_call.1} parent=47 // pred_fallthru
          _
      $region48: #{tpu_custom_call.1} parent=5 // pred_fallthru
        _
    $region6: #{tpu_custom_call.1} parent=1 // loop_footer
      %s18 = sadd.s32 1, %s14
    $region7: #{tpu_custom_call.1} parent=1 // loop_footer_branch
      %13 = sbr.rel target = $region3
    $region8: #{tpu_custom_call.1} parent=1 // loop_exit
      _
    %676 = vsyncpa [#allocation3], 1
    %s677 = scalar_lea.sflag [#allocation3], 1
    %678 = vsyncpa %s677, 1

// kernel: tpu_custom_call.1
$region0: #{tpu_custom_call.1}
  #allocation0 [shape = 'u32[]', space=smem, size = 0x4, offset = 0x4, fixed_abs, tag = 'smem constant byte address 0x4 - core index']
  #allocation1 [shape = 'u32[144,128]{1,0:T(1,128)}', space=vmem, size = 0x12000, scoped, tag = 'internal scratch']
  %s0 = inlined_call_operand.vmem [shape: f32[4,20,9,128], index: 0, kind: input, shape index: {}]
  %s1 = inlined_call_operand.vmem [shape: f32[3,3,128], index: 1, kind: input, shape index: {}]
  %s2 = inlined_call_operand.vmem [shape: f32[1,128], index: 2, kind: input, shape index: {}]
  %s3 = inlined_call_operand.vmem [shape: bf16[128,128], index: 3, kind: input, shape index: {}]
  %s4 = inlined_call_operand.vmem [shape: f32[1,128], index: 4, kind: input, shape index: {}]
  %s5 = inlined_call_operand.hbm [shape: f32[2,64,128], index: 5, kind: output, shape index: {}]
  %s6 = sld [smem:[#allocation0]]
  $region53: #{tpu_custom_call.1} parent=0
    _
  %s8 = ssub.s32 1, %s6
  %s9 = scalar_select 0, %s8, %s6
  $region1: #{tpu_custom_call.1} parent=0
    #allocation2 [shape = 'u8[32768]{0}', space=vmem, size = 0x8000, scoped, tag = 'output window, operand 0']
    #allocation3 [shape = 's32[2]{0}', space=sflag, size = 0x8, scoped, tag = 'scoped memory for tpu_custom_call.1']
    %10 = vsyncpa [#allocation3], 0
    %s11 = scalar_lea.sflag [#allocation3], 1
    %12 = vsyncpa %s11, 0
    loop: start=0, step=1, limit=6
    $region2: #{tpu_custom_call.1} parent=1 // loop_pre_header
      _
    $region3: #{tpu_custom_call.1} parent=1 // loop_header
      %s14 = sphi 0, %s18
      %p15 = scmp.ge.s32.totalorder %s14, 6
      %s21 = sphi 0, %s33
      %s22 = sphi 0, %s29
      %s23 = sphi 0, %s21
      %s24 = sphi 0, %s22
      %s25 = sphi 0, %s23
      %s26 = sphi 0, %s24
      %s40 = sphi 0, %s42
      %s43 = sphi 0, %s40
      %s44 = sphi 0, %s43
      %s60 = sphi 0, %s44
      %s64 = sphi 0, %s64
      %s66 = sphi 0, %s64
      %s67 = sphi 0, %s66
      %s81 = sphi 0, %s67
      %s85 = sphi 0, %s85
      %s87 = sphi 0, %s85
      %s88 = sphi 0, %s87
      %s102 = sphi 0, %s88
      %s106 = sphi 0, %s106
      %s108 = sphi 0, %s106
      %s109 = sphi 0, %s108
      %s123 = sphi 0, %s109
      %s127 = sphi 0, %s127
      %s129 = sphi 0, %s127
      %s130 = sphi 0, %s129
      %s144 = sphi 0, %s130
      %s152 = sphi 0, %s154
      %s155 = sphi 0, %s152
      %s156 = sphi 0, %s155
      %s172 = sphi 0, %s156
    $region4: #{tpu_custom_call.1} parent=1 // loop_header_branch
      %17 = sbr.rel (%p15) target = $region8
    $region5: #{tpu_custom_call.1} parent=1 // loop_body
      %s19 = ssub.s32 %s14, 1
      %s20 = ssub.s32 %s14, 2
      %s27 = sadd.s32 1, %s22
      %p28 = scmp.ge.s32.totalorder %s27, 2
      %s29 = scalar_select %p28, 0, %s27
      %s30 = sadd.s32 1, %s21
      %s31 = scalar_select %p28, %s30, %s21
      %p32 = scmp.ge.s32.totalorder %s31, 2
      %s33 = scalar_select %p32, 0, %s31
      %s34 = smul.u32 %s21, 2
      %s35 = sadd.s32 %s34, %s22
      %s36 = smul.u32 %s33, 2
      %s37 = sadd.s32 %s36, %s29
      %s38 = ssub.s32 %s35, %s37
      %p39 = scmp.eq.s32.totalorder %s38, 0
      %s41 = sadd.s32 %s40, 1
      %s42 = scalar_select %p39, %s40, %s41
      %p45 = pneg %p39
      %p46 = scmp.eq.s32.totalorder %s14, 3
      %p47 = por %p45, %p46
      %p48 = scmp.ne.s32.totalorder %s40, %s43
      %p49 = scmp.eq.s32.totalorder %s14, 0
      %p50 = por %p48, %p49
      %p51 = scmp.ne.s32.totalorder %s40, %s43
      %p52 = scmp.eq.s32.totalorder %s19, 3
      %p53 = por %p51, %p52
      %p54 = scmp.ne.s32.totalorder %s43, %s44
      %p55 = scmp.eq.s32.totalorder %s19, 0
      %p56 = por %p54, %p55
      %p57 = scmp.ne.s32.totalorder %s43, %s44
      %p58 = scmp.eq.s32.totalorder %s20, 3
      %p59 = por %p57, %p58
      %p61 = scmp.ne.s32.totalorder %s44, %s60
      %p62 = scmp.eq.s32.totalorder %s20, 0
      %p63 = por %p61, %p62
      %s65 = sadd.s32 %s64, 1
      %p68 = scmp.eq.s32.totalorder %s14, 3
      %p69 = scmp.ne.s32.totalorder %s64, %s66
      %p70 = scmp.eq.s32.totalorder %s14, 0
      %p71 = por %p69, %p70
      %p72 = scmp.ne.s32.totalorder %s64, %s66
      %p73 = scmp.eq.s32.totalorder %s19, 3
      %p74 = por %p72, %p73
      %p75 = scmp.ne.s32.totalorder %s66, %s67
      %p76 = scmp.eq.s32.totalorder %s19, 0
      %p77 = por %p75, %p76
      %p78 = scmp.ne.s32.totalorder %s66, %s67
      %p79 = scmp.eq.s32.totalorder %s20, 3
      %p80 = por %p78, %p79
      %p82 = scmp.ne.s32.totalorder %s67, %s81
      %p83 = scmp.eq.s32.totalorder %s20, 0
      %p84 = por %p82, %p83
      %s86 = sadd.s32 %s85, 1
      %p89 = scmp.eq.s32.totalorder %s14, 3
      %p90 = scmp.ne.s32.totalorder %s85, %s87
      %p91 = scmp.eq.s32.totalorder %s14, 0
      %p92 = por %p90, %p91
      %p93 = scmp.ne.s32.totalorder %s85, %s87
      %p94 = scmp.eq.s32.totalorder %s19, 3
      %p95 = por %p93, %p94
      %p96 = scmp.ne.s32.totalorder %s87, %s88
      %p97 = scmp.eq.s32.totalorder %s19, 0
      %p98 = por %p96, %p97
      %p99 = scmp.ne.s32.totalorder %s87, %s88
      %p100 = scmp.eq.s32.totalorder %s20, 3
      %p101 = por %p99, %p100
      %p103 = scmp.ne.s32.totalorder %s88, %s102
      %p104 = scmp.eq.s32.totalorder %s20, 0
      %p105 = por %p103, %p104
      %s107 = sadd.s32 %s106, 1
      %p110 = scmp.eq.s32.totalorder %s14, 3
      %p111 = scmp.ne.s32.totalorder %s106, %s108
      %p112 = scmp.eq.s32.totalorder %s14, 0
      %p113 = por %p111, %p112
      %p114 = scmp.ne.s32.totalorder %s106, %s108
      %p115 = scmp.eq.s32.totalorder %s19, 3
      %p116 = por %p114, %p115
      %p117 = scmp.ne.s32.totalorder %s108, %s109
      %p118 = scmp.eq.s32.totalorder %s19, 0
      %p119 = por %p117, %p118
      %p120 = scmp.ne.s32.totalorder %s108, %s109
      %p121 = scmp.eq.s32.totalorder %s20, 3
      %p122 = por %p120, %p121
      %p124 = scmp.ne.s32.totalorder %s109, %s123
      %p125 = scmp.eq.s32.totalorder %s20, 0
      %p126 = por %p124, %p125
      %s128 = sadd.s32 %s127, 1
      %p131 = scmp.eq.s32.totalorder %s14, 3
      %p132 = scmp.ne.s32.totalorder %s127, %s129
      %p133 = scmp.eq.s32.totalorder %s14, 0
      %p134 = por %p132, %p133
      %p135 = scmp.ne.s32.totalorder %s127, %s129
      %p136 = scmp.eq.s32.totalorder %s19, 3
      %p137 = por %p135, %p136
      %p138 = scmp.ne.s32.totalorder %s129, %s130
      %p139 = scmp.eq.s32.totalorder %s19, 0
      %p140 = por %p138, %p139
      %p141 = scmp.ne.s32.totalorder %s129, %s130
      %p142 = scmp.eq.s32.totalorder %s20, 3
      %p143 = por %p141, %p142
      %p145 = scmp.ne.s32.totalorder %s130, %s144
      %p146 = scmp.eq.s32.totalorder %s20, 0
      %p147 = por %p145, %p146
      %s148 = ssub.s32 %s21, %s33
      %s149 = ssub.s32 %s22, %s29
      %s150 = sor.u32 %s148, %s149
      %p151 = scmp.eq.s32.totalorder %s150, 0
      %s153 = sadd.s32 %s152, 1
      %s154 = scalar_select %p151, %s152, %s153
      %p157 = pneg %p151
      %p158 = scmp.eq.s32.totalorder %s14, 3
      %p159 = por %p157, %p158
      %p160 = scmp.ne.s32.totalorder %s152, %s155
      %p161 = scmp.eq.s32.totalorder %s14, 0
      %p162 = por %p160, %p161
      %p163 = scmp.ne.s32.totalorder %s152, %s155
      %p164 = scmp.eq.s32.totalorder %s19, 3
      %p165 = por %p163, %p164
      %p166 = scmp.ne.s32.totalorder %s155, %s156
      %p167 = scmp.eq.s32.totalorder %s19, 0
      %p168 = por %p166, %p167
      %p169 = scmp.ne.s32.totalorder %s155, %s156
      %p170 = scmp.eq.s32.totalorder %s20, 3
      %p171 = por %p169, %p170
      %p173 = scmp.ne.s32.totalorder %s156, %s172
      %p174 = scmp.eq.s32.totalorder %s20, 0
      %p175 = por %p173, %p174
      %p176 = scmp.le.s32.totalorder 1, %s14
      %p177 = scmp.lt.s32.totalorder %s14, 5
      %p178 = pnand %p176, %p177
      %p179 = pneg %p178
      // Predicated region
      $region9: #{tpu_custom_call.1} parent=5 // pred_check
        _
      $region10: #{tpu_custom_call.1} parent=5 // pred_check_branch
        %181 = sbr.rel (%p178) target = $region12
      $region11: #{tpu_custom_call.1} parent=5 // pred_region
        %s182 = ssub.s32 %s14, 1
        // Predicated region
        $region13: #{tpu_custom_call.1} parent=11 // pred_check
          %p183 = pneg %p77
        $region14: #{tpu_custom_call.1} parent=11 // pred_check_branch
          %185 = sbr.rel (%p183) target = $region16
        $region15: #{tpu_custom_call.1} parent=11 // pred_region
          _
        $region16: #{tpu_custom_call.1} parent=11 // pred_fallthru
          _
        // Predicated region
        $region17: #{tpu_custom_call.1} parent=11 // pred_check
          %p186 = pneg %p98
        $region18: #{tpu_custom_call.1} parent=11 // pred_check_branch
          %188 = sbr.rel (%p186) target = $region20
        $region19: #{tpu_custom_call.1} parent=11 // pred_region
          _
        $region20: #{tpu_custom_call.1} parent=11 // pred_fallthru
          _
        // Predicated region
        $region21: #{tpu_custom_call.1} parent=11 // pred_check
          %p189 = pneg %p119
        $region22: #{tpu_custom_call.1} parent=11 // pred_check_branch
          %191 = sbr.rel (%p189) target = $region24
        $region23: #{tpu_custom_call.1} parent=11 // pred_region
          _
        $region24: #{tpu_custom_call.1} parent=11 // pred_fallthru
          _
        // Predicated region
        $region25: #{tpu_custom_call.1} parent=11 // pred_check
          %p192 = pneg %p140
        $region26: #{tpu_custom_call.1} parent=11 // pred_check_branch
          %194 = sbr.rel (%p192) target = $region28
        $region27: #{tpu_custom_call.1} parent=11 // pred_region
          _
        $region28: #{tpu_custom_call.1} parent=11 // pred_fallthru
          _
      $region12: #{tpu_custom_call.1} parent=5 // pred_fallthru
        _
      %p195 = scmp.lt.s32.totalorder %s14, 4
      // Predicated region
      $region29: #{tpu_custom_call.1} parent=5 // pred_check
        %p196 = pneg %p195
      $region30: #{tpu_custom_call.1} parent=5 // pred_check_branch
        %198 = sbr.rel (%p196) target = $region32
      $region31: #{tpu_custom_call.1} parent=5 // pred_region
        // Predicated region
        $region33: #{tpu_custom_call.1} parent=31 // pred_check
          %p199 = pneg %p50
        $region34: #{tpu_custom_call.1} parent=31 // pred_check_branch
          %201 = sbr.rel (%p199) target = $region36
        $region35: #{tpu_custom_call.1} parent=31 // pred_region
          %s202 = smul.u32 %s21, 2
          %s203 = sadd.s32 %s202, %s22
          %p204 = scmp.lt.s32.totalorder %s203, 3
          %s205 = scalar_select %p204, %s203, 3
          %s206 = smul.addr %s205, 40
          %s207 = smul.addr %s206, 8
          %s208 = scalar_lea.vmem %s0, %s207
          %s209 = smul.u32 %s21, 2
          %s210 = sadd.s32 %s209, %s22
        $region36: #{tpu_custom_call.1} parent=31 // pred_fallthru
          _
      $region32: #{tpu_custom_call.1} parent=5 // pred_fallthru
        _
      %p211 = scmp.le.s32.totalorder 1, %s14
      %p212 = scmp.lt.s32.totalorder %s14, 5
      %p213 = pnand %p211, %p212
      %p214 = pneg %p213
      // Predicated region
      $region37: #{tpu_custom_call.1} parent=5 // pred_check
        _
      $region38: #{tpu_custom_call.1} parent=5 // pred_check_branch
        %216 = sbr.rel (%p213) target = $region40
      $region39: #{tpu_custom_call.1} parent=5 // pred_region
        %s217 = ssub.s32 %s14, 1
        %s218 = smul.u32 %s23, 2
        %s219 = sadd.s32 %s218, %s24
        %p220 = scmp.lt.s32.totalorder %s219, 3
        %s221 = scalar_select %p220, %s219, 3
        %s222 = smul.addr %s221, 40
        %s223 = smul.addr %s222, 8
        %s224 = scalar_lea.vmem %s0, %s223
        %p225 = pneg %p56
        %p226 = pneg %p53
        %p227 = pneg %p77
        %p228 = pneg %p74
        %p229 = pneg %p98
        %p230 = pneg %p95
        %p231 = pneg %p119
        %p232 = pneg %p116
        %p233 = pneg %p140
        %p234 = pneg %p137
        %p235 = pneg %p168
        %p236 = pneg %p165
        %s237 = sand.u32 %s155, 1
        %s238 = scalar_lea.sflag [#allocation3], %s237
        %s239 = sand.u32 %s155, 1
        %s240 = smul.addr %s239, 32
        %s241 = scalar_lea.vmem [#allocation2], %s240
        %s242 = smul.u32 %s23, 2
        %s243 = sadd.s32 %s242, %s24
        %p244 = scmp.lt.s32.totalorder %s243, 3
        %s245 = scalar_select %p244, %s243, 3
        %s246 = smul.addr %s245, 40
        %s247 = smul.addr %s246, 8
        %s248 = scalar_lea.vmem %s0, %s247
        %s249 = smul.u32 %s23, 2
        %s250 = sadd.s32 %s249, %s24
        %s251 = smul.u32 4, %s24
        %v253 = vld [vmem:[%s1] sm:$0x7]
        %v254 = vld [vmem:[%s1 + $0x4] sm:$0x7]
        %v255 = vld [vmem:[%s1 + $0x8] sm:$0x7]
        %v256 = vld [vmem:[%s248] sm:$0xff]
        %v257 = vld [vmem:[%s248 + $0x8] sm:$0x1]
        %v258 = vld [vmem:[%s248 + $0x10] sm:$0xff]
        %v259 = vld [vmem:[%s248 + $0x18] sm:$0x1]
        %v260 = vld [vmem:[%s248 + $0x20] sm:$0xff]
        %v261 = vld [vmem:[%s248 + $0x28] sm:$0x1]
        %v262 = vld [vmem:[%s248 + $0x30] sm:$0xff]
        %v263 = vld [vmem:[%s248 + $0x38] sm:$0x1]
        %v264 = vlaneseq
        %v265 = vshrl.u32 %v264, 7
        %v266 = vsub.s32 0, %v265
        %v267 = vrot.slane %v253, %v266
        %v268 = vmul.f32 %v256, %v267
        %v269 = vmul.f32 %v258, %v267
        %v270 = vmul.f32 %v260, %v267
        %v271 = vmul.f32 %v262, %v267
        %s272 = scalar_lea.vmem %s248, 80
        %v273 = vld [vmem:[%s272] sm:$0xff]
        %v274 = vld [vmem:[%s272 + $0x10] sm:$0xff]
        %v275 = vld [vmem:[%s272 + $0x20] sm:$0xff]
        %v276 = vld [vmem:[%s272 + $0x30] sm:$0xff]
        %v277 = vlaneseq
        %v278 = vshrl.u32 %v277, 7
        %v279 = vsub.s32 1, %v278
        %v280 = vrot.slane %v253, %v279
        %v281 = vmul.f32 %v273, %v280
        %v282 = vmul.f32 %v274, %v280
        %v283 = vmul.f32 %v275, %v280
        %v284 = vmul.f32 %v276, %v280
        %v285 = vadd.f32 %v268, %v281
        %v286 = vadd.f32 %v269, %v282
        %v287 = vadd.f32 %v270, %v283
        %v288 = vadd.f32 %v271, %v284
        %v289 = vlaneseq
        %v290 = vshrl.u32 %v289, 7
        %v291 = vsub.s32 2, %v290
        %v292 = vrot.slane %v253, %v291
        %v293 = vmul.f32 %v256, %v292
        %v294 = vmul.f32 %v257, %v292
        %v295 = vmul.f32 %v258, %v292
        %v296 = vmul.f32 %v259, %v292
        %v297 = vmul.f32 %v260, %v292
        %v298 = vmul.f32 %v261, %v292
        %v299 = vmul.f32 %v262, %v292
        %v300 = vmul.f32 %v263, %v292
        %vm309 = vcmask 1046528
        %v310 = vrot.slane %v293, 1
        %v311 = vrot.slane %v294, 1
        %v312 = vsel %vm309, %v310, %v311
        %v313 = vrot.slane %v295, 1
        %v314 = vrot.slane %v296, 1
        %v315 = vsel %vm309, %v313, %v314
        %v316 = vrot.slane %v297, 1
        %v317 = vrot.slane %v298, 1
        %v318 = vsel %vm309, %v316, %v317
        %v319 = vrot.slane %v299, 1
        %v320 = vrot.slane %v300, 1
        %v321 = vsel %vm309, %v319, %v320
        %v326 = vadd.f32 %v285, %v312
        %v327 = vadd.f32 %v286, %v315
        %v328 = vadd.f32 %v287, %v318
        %v329 = vadd.f32 %v288, %v321
        %s330 = scalar_lea.vmem %s248, 160
        %v331 = vld [vmem:[%s330] sm:$0xff]
        %v332 = vld [vmem:[%s330 + $0x8] sm:$0x1]
        %v333 = vld [vmem:[%s330 + $0x10] sm:$0xff]
        %v334 = vld [vmem:[%s330 + $0x18] sm:$0x1]
        %v335 = vld [vmem:[%s330 + $0x20] sm:$0xff]
        %v336 = vld [vmem:[%s330 + $0x28] sm:$0x1]
        %v337 = vld [vmem:[%s330 + $0x30] sm:$0xff]
        %v338 = vld [vmem:[%s330 + $0x38] sm:$0x1]
        %v339 = vlaneseq
        %v340 = vshrl.u32 %v339, 7
        %v341 = vsub.s32 0, %v340
        %v342 = vrot.slane %v254, %v341
        %v343 = vmul.f32 %v331, %v342
        %v344 = vmul.f32 %v333, %v342
        %v345 = vmul.f32 %v335, %v342
        %v346 = vmul.f32 %v337, %v342
        %v347 = vadd.f32 %v326, %v343
        %v348 = vadd.f32 %v327, %v344
        %v349 = vadd.f32 %v328, %v345
        %v350 = vadd.f32 %v329, %v346
        %s351 = scalar_lea.vmem %s248, 240
        %v352 = vld [vmem:[%s351] sm:$0xff]
        %v353 = vld [vmem:[%s351 + $0x10] sm:$0xff]
        %v354 = vld [vmem:[%s351 + $0x20] sm:$0xff]
        %v355 = vld [vmem:[%s351 + $0x30] sm:$0xff]
        %v356 = vlaneseq
        %v357 = vshrl.u32 %v356, 7
        %v358 = vsub.s32 1, %v357
        %v359 = vrot.slane %v254, %v358
        %v360 = vmul.f32 %v352, %v359
        %v361 = vmul.f32 %v353, %v359
        %v362 = vmul.f32 %v354, %v359
        %v363 = vmul.f32 %v355, %v359
        %v364 = vadd.f32 %v347, %v360
        %v365 = vadd.f32 %v348, %v361
        %v366 = vadd.f32 %v349, %v362
        %v367 = vadd.f32 %v350, %v363
        %v368 = vlaneseq
        %v369 = vshrl.u32 %v368, 7
        %v370 = vsub.s32 2, %v369
        %v371 = vrot.slane %v254, %v370
        %v372 = vmul.f32 %v331, %v371
        %v373 = vmul.f32 %v332, %v371
        %v374 = vmul.f32 %v333, %v371
        %v375 = vmul.f32 %v334, %v371
        %v376 = vmul.f32 %v335, %v371
        %v377 = vmul.f32 %v336, %v371
        %v378 = vmul.f32 %v337, %v371
        %v379 = vmul.f32 %v338, %v371
        %v388 = vrot.slane %v372, 1
        %v389 = vrot.slane %v373, 1
        %v390 = vsel %vm309, %v388, %v389
        %v391 = vrot.slane %v374, 1
        %v392 = vrot.slane %v375, 1
        %v393 = vsel %vm309, %v391, %v392
        %v394 = vrot.slane %v376, 1
        %v395 = vrot.slane %v377, 1
        %v396 = vsel %vm309, %v394, %v395
        %v397 = vrot.slane %v378, 1
        %v398 = vrot.slane %v379, 1
        %v399 = vsel %vm309, %v397, %v398
        %v404 = vadd.f32 %v364, %v390
        %v405 = vadd.f32 %v365, %v393
        %v406 = vadd.f32 %v366, %v396
        %v407 = vadd.f32 %v367, %v399
        %s408 = scalar_lea.vmem %s248, 16
        %v409 = vld [vmem:[%s408] sm:$0xff]
        %v410 = vld [vmem:[%s408 + $0x8] sm:$0x1]
        %v411 = vld [vmem:[%s408 + $0x10] sm:$0xff]
        %v412 = vld [vmem:[%s408 + $0x18] sm:$0x1]
        %v413 = vld [vmem:[%s408 + $0x20] sm:$0xff]
        %v414 = vld [vmem:[%s408 + $0x28] sm:$0x1]
        %v415 = vld [vmem:[%s408 + $0x30] sm:$0xff]
        %v416 = vld [vmem:[%s408 + $0x38] sm:$0x1]
        %v417 = vlaneseq
        %v418 = vshrl.u32 %v417, 7
        %v419 = vsub.s32 0, %v418
        %v420 = vrot.slane %v255, %v419
        %v421 = vmul.f32 %v409, %v420
        %v422 = vmul.f32 %v411, %v420
        %v423 = vmul.f32 %v413, %v420
        %v424 = vmul.f32 %v415, %v420
        %v425 = vadd.f32 %v404, %v421
        %v426 = vadd.f32 %v405, %v422
        %v427 = vadd.f32 %v406, %v423
        %v428 = vadd.f32 %v407, %v424
        %s429 = scalar_lea.vmem %s248, 96
        %v430 = vld [vmem:[%s429] sm:$0xff]
        %v431 = vld [vmem:[%s429 + $0x10] sm:$0xff]
        %v432 = vld [vmem:[%s429 + $0x20] sm:$0xff]
        %v433 = vld [vmem:[%s429 + $0x30] sm:$0xff]
        %v434 = vlaneseq
        %v435 = vshrl.u32 %v434, 7
        %v436 = vsub.s32 1, %v435
        %v437 = vrot.slane %v255, %v436
        %v438 = vmul.f32 %v430, %v437
        %v439 = vmul.f32 %v431, %v437
        %v440 = vmul.f32 %v432, %v437
        %v441 = vmul.f32 %v433, %v437
        %v442 = vadd.f32 %v425, %v438
        %v443 = vadd.f32 %v426, %v439
        %v444 = vadd.f32 %v427, %v440
        %v445 = vadd.f32 %v428, %v441
        %v446 = vlaneseq
        %v447 = vshrl.u32 %v446, 7
        %v448 = vsub.s32 2, %v447
        %v449 = vrot.slane %v255, %v448
        %v450 = vmul.f32 %v409, %v449
        %v451 = vmul.f32 %v410, %v449
        %v452 = vmul.f32 %v411, %v449
        %v453 = vmul.f32 %v412, %v449
        %v454 = vmul.f32 %v413, %v449
        %v455 = vmul.f32 %v414, %v449
        %v456 = vmul.f32 %v415, %v449
        %v457 = vmul.f32 %v416, %v449
        %v466 = vrot.slane %v450, 1
        %v467 = vrot.slane %v451, 1
        %v468 = vsel %vm309, %v466, %v467
        %v469 = vrot.slane %v452, 1
        %v470 = vrot.slane %v453, 1
        %v471 = vsel %vm309, %v469, %v470
        %v472 = vrot.slane %v454, 1
        %v473 = vrot.slane %v455, 1
        %v474 = vsel %vm309, %v472, %v473
        %v475 = vrot.slane %v456, 1
        %v476 = vrot.slane %v457, 1
        %v477 = vsel %vm309, %v475, %v476
        %v482 = vadd.f32 %v442, %v468
        %v483 = vadd.f32 %v443, %v471
        %v484 = vadd.f32 %v444, %v474
        %v485 = vadd.f32 %v445, %v477
        %v486 = vld [vmem:[%s2] sm:$0x1]
        %v488 = vlaneseq
        %v489 = vshrl.u32 %v488, 7
        %v490 = vsub.s32 0, %v489
        %v491 = vrot.slane %v486, %v490
        %v493 = vadd.f32 %v482, %v491
        %v494 = vadd.f32 %v483, %v491
        %v495 = vadd.f32 %v484, %v491
        %v496 = vadd.f32 %v485, %v491
        %v497 = vmax.f32 %v493, 0.0
        %v498 = vmax.f32 %v494, 0.0
        %v499 = vmax.f32 %v495, 0.0
        %v500 = vmax.f32 %v496, 0.0
        %v501 = vmin.f32 %v497, 6.0
        %v502 = vmin.f32 %v498, 6.0
        %v503 = vmin.f32 %v499, 6.0
        %v504 = vmin.f32 %v500, 6.0
        %v505 = vpack.c.bf16 %v502, %v501
        %v506 = vpack.c.bf16 %v504, %v503
        %v507 = vld [vmem:[%s3] sm:$0xf]
        %v508 = vld [vmem:[%s3 + $0x4] sm:$0xf]
        %v509 = vld [vmem:[%s3 + $0x8] sm:$0xf]
        %v510 = vld [vmem:[%s3 + $0xc] sm:$0xf]
        %v511 = vld [vmem:[%s3 + $0x10] sm:$0xf]
        %v512 = vld [vmem:[%s3 + $0x14] sm:$0xf]
        %v513 = vld [vmem:[%s3 + $0x18] sm:$0xf]
        %v514 = vld [vmem:[%s3 + $0x1c] sm:$0xf]
        %v515 = vld [vmem:[%s3 + $0x20] sm:$0xf]
        %v516 = vld [vmem:[%s3 + $0x24] sm:$0xf]
        %v517 = vld [vmem:[%s3 + $0x28] sm:$0xf]
        %v518 = vld [vmem:[%s3 + $0x2c] sm:$0xf]
        %v519 = vld [vmem:[%s3 + $0x30] sm:$0xf]
        %v520 = vld [vmem:[%s3 + $0x34] sm:$0xf]
        %v521 = vld [vmem:[%s3 + $0x38] sm:$0xf]
        %v522 = vld [vmem:[%s3 + $0x3c] sm:$0xf]
        %v523 = vld [vmem:[%s4] sm:$0x1]
        %v525 = vlaneseq
        %v526 = vshrl.u32 %v525, 7
        %v527 = vsub.s32 0, %v526
        %v528 = vrot.slane %v523, %v527
        %v546 = vunpack.c.l.b16 %v507
        %v547 = vunpack.c.l.b16 %v508
        %v548 = vunpack.c.l.b16 %v509
        %v549 = vunpack.c.l.b16 %v510
        %v550 = vunpack.c.l.b16 %v511
        %v551 = vunpack.c.l.b16 %v512
        %v552 = vunpack.c.l.b16 %v513
        %v553 = vunpack.c.l.b16 %v514
        %v554 = vunpack.c.l.b16 %v515
        %v555 = vunpack.c.l.b16 %v516
        %v556 = vunpack.c.l.b16 %v517
        %v557 = vunpack.c.l.b16 %v518
        %v558 = vunpack.c.l.b16 %v519
        %v559 = vunpack.c.l.b16 %v520
        %v560 = vunpack.c.l.b16 %v521
        %v561 = vunpack.c.l.b16 %v522
        %v562 = vpack.c.b16 %v547, %v546
        %v563 = vpack.c.b16 %v549, %v548
        %v564 = vpack.c.b16 %v551, %v550
        %v565 = vpack.c.b16 %v553, %v552
        %v566 = vpack.c.b16 %v555, %v554
        %v567 = vpack.c.b16 %v557, %v556
        %v568 = vpack.c.b16 %v559, %v558
        %v569 = vpack.c.b16 %v561, %v560
        %578 = vmatprep.subr.bf16.mxu0 0
        %579 = vmatpush1.bf16.msra.mxu0 %v569
        %580 = vmatprep.subr.bf16.mxu0 0
        %581 = vmatpush1.bf16.msra.mxu0 %v568
        %582 = vmatprep.subr.bf16.mxu0 0
        %583 = vmatpush1.bf16.msra.mxu0 %v567
        %584 = vmatprep.subr.bf16.mxu0 0
        %585 = vmatpush1.bf16.msra.mxu0 %v566
        %586 = vmatprep.subr.bf16.mxu0 0
        %587 = vmatpush1.bf16.msra.mxu0 %v565
        %588 = vmatprep.subr.bf16.mxu0 0
        %589 = vmatpush1.bf16.msra.mxu0 %v564
        %590 = vmatprep.subr.bf16.mxu0 0
        %591 = vmatpush1.bf16.msra.mxu0 %v563
        %592 = vmatprep.subr.bf16.mxu0 0
        %593 = vmatpush1.bf16.msra.mxu0 %v562
        %594 = vmatprep.subr.bf16.mxu0 0
        %595 = vmatpush2.bf16.msra.mxu0 0
        %596 = vmatprep.subr.bf16.mxu0 0
        %597 = vmatpush2.bf16.msra.mxu0 0
        %598 = vmatprep.subr.bf16.mxu0 0
        %599 = vmatpush2.bf16.msra.mxu0 0
        %600 = vmatprep.subr.bf16.mxu0 0
        %601 = vmatpush2.bf16.msra.mxu0 0
        %602 = vmatprep.subr.bf16.mxu0 0
        %603 = vmatpush2.bf16.msra.mxu0 0
        %604 = vmatprep.subr.bf16.mxu0 0
        %605 = vmatpush2.bf16.msra.mxu0 0
        %606 = vmatprep.subr.bf16.mxu0 0
        %607 = vmatpush2.bf16.msra.mxu0 0
        %608 = vmatprep.subr.bf16.mxu0 0
        %609 = vmatpush2.bf16.msra.mxu0 0
        %610 = vmatprep.mubr.bf16.mxu0 0
        %611 = vmatmul.mubr.bf16.gmra.mxu0 %v505
        %v612 = vpop.f32.mrf.mxu0
        %v613 = vadd.f32 %v528, %v612
        %v614 = vpop.f32.mrf.mxu0
        %v615 = vpop.f32.mrf.mxu0
        %v616 = vadd.f32 %v528, %v615
        %v617 = vpop.f32.mrf.mxu0
        %618 = vmatprep.mubr.bf16.mxu0 0
        %619 = vmatmul.mubr.bf16.gmra.mxu0 %v506
        %v620 = vpop.f32.mrf.mxu0
        %v621 = vadd.f32 %v528, %v620
        %v622 = vpop.f32.mrf.mxu0
        %v623 = vpop.f32.mrf.mxu0
        %v624 = vadd.f32 %v528, %v623
        %v625 = vpop.f32.mrf.mxu0
        %626 = vdwg.mxu0
        %v627 = vmax.f32 %v613, 0.0
        %v628 = vmax.f32 %v616, 0.0
        %v629 = vmax.f32 %v621, 0.0
        %v630 = vmax.f32 %v624, 0.0
        %v631 = vmin.f32 %v627, 6.0
        %v632 = vmin.f32 %v628, 6.0
        %v633 = vmin.f32 %v629, 6.0
        %v634 = vmin.f32 %v630, 6.0
        %635 = vst [vmem:[%s241] sm:$0xff] %v631
        %636 = vst [vmem:[%s241 + $0x8] sm:$0xff] %v632
        %637 = vst [vmem:[%s241 + $0x10] sm:$0xff] %v633
        %638 = vst [vmem:[%s241 + $0x18] sm:$0xff] %v634
        %s639 = sand.u32 %s155, 1
        %s640 = scalar_lea.sflag [#allocation3], %s639
        %s641 = sand.u32 %s155, 1
        %s642 = smul.addr %s641, 32
        %s643 = scalar_lea.vmem [#allocation2], %s642
        // Predicated region
        $region41: #{tpu_custom_call.1} parent=39 // pred_check
          %p644 = pneg %p165
        $region42: #{tpu_custom_call.1} parent=39 // pred_check_branch
          %646 = sbr.rel (%p644) target = $region44
        $region43: #{tpu_custom_call.1} parent=39 // pred_region
          %s647 = smul.u32 4, %s24
          %s649 = ssub.s32 512, 512
          %650 = vsyncadd %s640, %s649
          %s651 = smul.addr %s23, 8
          %s652 = sadd.s32 %s647, %s651
          %s653 = smul.addr %s652, 128
          %s654 = scalar_lea.hbm %s5, %s653
          %s655 = sshll.u32 %s643, 4
          %s656 = int_to_ptr.vmem [resolvable:$true] %s655
          %661 = dma.vmem_to_hbm [thread:$0]  %s656, 512, %s654, %s640, 128, 128, 8
        $region44: #{tpu_custom_call.1} parent=39 // pred_fallthru
          _
      $region40: #{tpu_custom_call.1} parent=5 // pred_fallthru
        _
      %p662 = scmp.le.s32.totalorder 2, %s14
      // Predicated region
      $region45: #{tpu_custom_call.1} parent=5 // pred_check
        %p663 = pneg %p662
      $region46: #{tpu_custom_call.1} parent=5 // pred_check_branch
        %665 = sbr.rel (%p663) target = $region48
      $region47: #{tpu_custom_call.1} parent=5 // pred_region
        %s666 = ssub.s32 %s14, 2
        // Predicated region
        $region49: #{tpu_custom_call.1} parent=47 // pred_check
          %p667 = pneg %p171
        $region50: #{tpu_custom_call.1} parent=47 // pred_check_branch
          %669 = sbr.rel (%p667) target = $region52
        $region51: #{tpu_custom_call.1} parent=47 // pred_region
          %s670 = sand.u32 %s156, 1
          %s671 = scalar_lea.sflag [#allocation3], %s670
          %s672 = sand.u32 %s156, 1
          %s673 = smul.addr %s672, 32
          %s674 = scalar_lea.vmem [#allocation2], %s673
          %675 = dma.done %s671, 512
        $region52: #{tpu_custom_call.1} parent=47 // pred_fallthru
          _
      $region48: #{tpu_custom_call.1} parent=5 // pred_fallthru
        _
    $region6: #{tpu_custom_call.1} parent=1 // loop_footer
      %s18 = sadd.s32 1, %s14
    $region7: #{tpu_custom_call.1} parent=1 // loop_footer_branch
      %13 = sbr.rel target = $region3
    $region8: #{tpu_custom_call.1} parent=1 // loop_exit
      _
    %676 = vsyncpa [#allocation3], 1
    %s677 = scalar_lea.sflag [#allocation3], 1
    %678 = vsyncpa %s677, 1

</llo_original>
